<compile_context>
chip_gen: v7x
topology: tpu7x:2x2x1
jax: 0.10.0
libtpu: 0.0.40
codegen_flags: <defaults>
</compile_context>

<pallas_src>
import jax
import jax.numpy as jnp
from jax.experimental import pallas as pl
from jax.experimental.pallas import tpu as pltpu

# ----------------------------- model dims -----------------------------------
B = 2          # batch
T = 8          # decoder sequence length (block_size)
S = 8          # encoder sequence length
C = 32         # n_embed
N_HEAD = 4     # n_head
HEAD_DIM = C // N_HEAD
FF = 4 * C     # 128
EPS = 1e-6

assert T == S  # one spread/segment layout reused for self- and cross-attention
BT = B * T                # 16 rows (batch folded into the matmul M dimension)
KV = S                    # key/value length (T == S == 8)
HKV = N_HEAD * KV         # 32 lanes per batch block
BHKV = B * HKV            # 64 score lanes (heads and batches folded)
OUT_W = 128               # packed lane-dense output: [ x | wei slab | zero pad ]


def _matmul_dtype():
    """bf16 MXU operands on v6e/v7x, f32 on v5e and older."""
    try:
        kind = jax.devices()[0].device_kind.lower()
    except Exception:
        return jnp.float32
    if any(t in kind for t in ("v6", "v7", "tpu7")):
        return jnp.bfloat16
    return jnp.float32


MM_DTYPE = _matmul_dtype()


# ----------------------------- fused kernel ---------------------------------
def fused_decoder_kernel(
    x_ref, enc_ref, dmask_ref, emask_ref,
    spread_ref, bd_ref, segones_ref, valid_ref,
    w_attn_ref, b_attn_ref, w_ff1_ref, b_ff1_ref, w_ff2_ref, b_ff2_ref,
    ln_g_ref, ln_b_ref,
    out_ref,
):
    f32 = jnp.float32
    x = x_ref[...]               # (BT, C)      f32
    enc = enc_ref[...]           # (B*KV, C)    f32
    dmask = dmask_ref[...]       # (BT, BHKV)   additive mask (0 / -1e9)
    emask = emask_ref[...]       # (BT, BHKV)
    spread = spread_ref[...]     # (BHKV, B*KV) 0/1: replicate each batch's kv rows per head
    bd = bd_ref[...]             # (BHKV, C)    0/1 block-diagonal head-feature mask
    seg_ones = segones_ref[...]  # (BHKV, BHKV) 0/1 block-of-ones per 8-lane segment
    valid = valid_ref[...]       # (BT, BHKV)   0/1 same-batch validity
    scale = 1.0 / (HEAD_DIM ** 0.5)

    def mdot(a, b):
        return jnp.dot(a.astype(MM_DTYPE), b.astype(MM_DTYPE),
                       preferred_element_type=f32)

    def layernorm(v, idx):
        g = ln_g_ref[idx:idx + 1, :]
        bb = ln_b_ref[idx:idx + 1, :]
        mu = jnp.mean(v, axis=-1, keepdims=True)
        ms = jnp.mean(v * v, axis=-1, keepdims=True)     # fused stats
        var = ms - mu * mu
        return (v - mu) * jax.lax.rsqrt(var + EPS) * g + bb

    def attention(q_in, kv_in, w_off, mask_add, exact):
        """All heads & batches in one set of block-diagonal matmuls."""
        wq = w_attn_ref[w_off + 0]
        wk = w_attn_ref[w_off + 1]
        wv = w_attn_ref[w_off + 2]
        wo = w_attn_ref[w_off + 3]
        bq = b_attn_ref[w_off + 0:w_off + 1, :]
        bk = b_attn_ref[w_off + 1:w_off + 2, :]
        bv = b_attn_ref[w_off + 2:w_off + 3, :]
        bo = b_attn_ref[w_off + 3:w_off + 4, :]

        # Replicate each batch's kv rows once per head: (BHKV, B*KV)@(B*KV, C).
        kv_rep = jnp.dot(spread, kv_in,
                         preferred_element_type=f32).astype(MM_DTYPE)
        q = mdot(q_in, wq) + bq                          # (BT, C)
        kslab = (mdot(kv_rep, wk) + bk) * bd             # (BHKV, C) block-diag K^T slab
        vslab = (mdot(kv_rep, wv) + bv) * bd             # (BHKV, C) block-diag V slab

        # Scores for every (batch, head, key) lane in one dot: (BT, BHKV).
        s = jax.lax.dot_general(q, kslab, (((1,), (1,)), ((), ())),
                                preferred_element_type=f32) * scale + mask_add
        s = s - jnp.max(s, axis=-1, keepdims=True)       # row max: valid for each segment
        p = jnp.exp(s)
        # Per-head-segment sums broadcast across their 8 lanes with one MXU op.
        denom = jnp.dot(p, seg_ones, preferred_element_type=f32)
        if exact:                                        # returned-wei path: exact softmax
            p = p / denom
        else:
            p = p * pl.reciprocal(denom, approx=True)
        p = p * valid                                    # zero cross-batch segments
        heads = jnp.dot(p, vslab, preferred_element_type=f32)   # (BT, C), lane-dense
        return mdot(heads, wo) + bo, p

    # --- self attention (pre-LN, residual) ---
    x1 = layernorm(x, 0)
    sa_out, _ = attention(x1, x1, 0, dmask, exact=False)
    x = x + sa_out

    # --- cross attention (pre-LN, residual); its softmax weights are returned ---
    x2 = layernorm(x, 1)
    ca_out, wei = attention(x2, enc, 4, emask, exact=True)
    x = x + ca_out

    # --- feed forward (Linear -> ReLU -> Linear), residual ---
    # TODO(synk): dropout (train mode) not implemented — eval-mode identity.
    x3 = layernorm(x, 2)
    h = jnp.maximum(mdot(x3, w_ff1_ref[...]) + b_ff1_ref[...], 0.0)
    x = x + mdot(h, w_ff2_ref[...]) + b_ff2_ref[...]

    # single lane-dense packed output: [ x (C) | wei slab (BHKV) | zero pad ]
    out_ref[:, 0:C] = x
    out_ref[:, C:C + BHKV] = wei
    out_ref[:, C + BHKV:] = jnp.zeros((BT, OUT_W - C - BHKV), f32)


# ----------------------------- wrapper ---------------------------------------
def _full_spec(shape):
    return pl.BlockSpec(shape, lambda i: (0,) * len(shape))


def _host_constants():
    rows = jnp.arange(BHKV)
    b_row = rows // HKV
    h_row = (rows % HKV) // KV
    s_row = rows % KV
    spread = jax.nn.one_hot(b_row * KV + s_row, B * KV, dtype=jnp.float32)
    bd = (jnp.arange(C)[None, :] // HEAD_DIM == h_row[:, None]).astype(jnp.float32)
    seg = rows // KV
    seg_ones = (seg[None, :] == seg[:, None]).astype(jnp.float32)
    valid = (b_row[None, :] == (jnp.arange(BT) // T)[:, None]).astype(jnp.float32)
    return spread, bd, seg_ones, valid


def _expand_mask(mask):
    """(B, T, KV) {0,1} -> (BT, BHKV) additive mask (0 keep / -1e9 masked) tiled
    per head inside each batch's own block; cross-batch columns stay 0 (they are
    zeroed after softmax by the validity mask)."""
    add = (mask.astype(jnp.float32) - 1.0) * 1e9
    add = jnp.broadcast_to(add[:, :, None, :], (B, T, N_HEAD, KV)).reshape(B, T, HKV)
    eye = jnp.eye(B, dtype=jnp.float32)
    return (add[:, :, None, :] * eye[:, None, :, None]).reshape(BT, BHKV)


@jax.jit
def decoder_block(x, enc_output, enc_mask, dec_mask, c_mask,
                  w_attn, b_attn, w_ff1, b_ff1, w_ff2, b_ff2, ln_g, ln_b):
    """x:(B,T,C) enc_output:(B,S,C) masks {0,1}. Returns (x_out, wei)."""
    del c_mask  # unused by Decoder.forward (kept for signature parity)
    x2d = x.reshape(BT, C)
    enc2d = enc_output.reshape(B * KV, C)
    dmask = _expand_mask(dec_mask)
    emask = _expand_mask(enc_mask)
    spread, bd, seg_ones, valid = _host_constants()

    inputs = (x2d, enc2d, dmask, emask, spread, bd, seg_ones, valid,
              w_attn.astype(MM_DTYPE), b_attn,
              w_ff1.astype(MM_DTYPE), b_ff1,
              w_ff2.astype(MM_DTYPE), b_ff2,
              ln_g, ln_b)

    packed = pl.pallas_call(
        fused_decoder_kernel,
        grid=(1,),
        in_specs=[_full_spec(a.shape) for a in inputs],
        out_specs=_full_spec((BT, OUT_W)),
        out_shape=jax.ShapeDtypeStruct((BT, OUT_W), jnp.float32),
        compiler_params=pltpu.CompilerParams(
            dimension_semantics=("arbitrary",)),
    )(*inputs)

    x_out = packed[:, :C].reshape(B, T, C)
    wei_slab = packed[:, C:C + BHKV].reshape(B, T, B, N_HEAD, KV)
    idx = jnp.arange(B)
    wei = wei_slab[idx, :, idx].transpose(0, 2, 1, 3)   # (B, N_HEAD, T, S)
    return x_out, wei


# ----------------------------- param init -------------------------------------
def init_params(key):
    """Weights packed along a leading axis: [sa_q, sa_k, sa_v, sa_o, ca_q, ca_k, ca_v, ca_o]."""
    ks = jax.random.split(key, 6)
    w_attn = jax.random.normal(ks[0], (8, C, C), jnp.float32) * 0.02
    b_attn = jax.random.normal(ks[1], (8, C), jnp.float32) * 0.01
    w_ff1 = jax.random.normal(ks[2], (C, FF), jnp.float32) * 0.02
    b_ff1 = jax.random.normal(ks[3], (1, FF), jnp.float32) * 0.01
    w_ff2 = jax.random.normal(ks[4], (FF, C), jnp.float32) * 0.02
    b_ff2 = jax.random.normal(ks[5], (1, C), jnp.float32) * 0.01
    ln_g = jnp.ones((3, C), jnp.float32)     # ln1, ln2, ln3
    ln_b = jnp.zeros((3, C), jnp.float32)
    return (w_attn, b_attn, w_ff1, b_ff1, w_ff2, b_ff2, ln_g, ln_b)


# ----------------------------- main -------------------------------------------
if __name__ == "__main__":
    key = jax.random.PRNGKey(0)
    k_x, k_enc, k_p = jax.random.split(key, 3)

    x = jax.random.normal(k_x, (B, T, C), jnp.float32)
    enc_output = jax.random.normal(k_enc, (B, S, C), jnp.float32)

    # causal decoder self-attention mask; encoder mask with the last enc position
    # of batch 1 masked out to exercise the masking path
    dec_mask = jnp.broadcast_to(jnp.tril(jnp.ones((T, T), jnp.float32)), (B, T, T))
    enc_mask = jnp.ones((B, T, S), jnp.float32).at[1, :, -1].set(0.0)
    c_mask = jnp.ones((B, T, S), jnp.float32)  # unused by Decoder.forward

    params = init_params(k_p)

    out_x, out_wei = decoder_block(x, enc_output, enc_mask, dec_mask, c_mask, *params)
    jax.block_until_ready((out_x, out_wei))

    assert out_x.shape == (B, T, C)
    assert out_wei.shape == (B, N_HEAD, T, S)
    assert bool(jnp.all(jnp.isfinite(out_x))) and bool(jnp.all(jnp.isfinite(out_wei)))
    # cross-attention weights are an exact softmax -> rows sum to 1
    assert bool(jnp.allclose(jnp.sum(out_wei, axis=-1), 1.0, atol=1e-3))
    # masked encoder position must receive zero attention for batch 1
    assert bool(jnp.all(out_wei[1, :, :, -1] < 1e-6))

    print("KERNEL_OK")
</pallas_src>

<mosaic_0001>
module attributes {stable_mosaic.version = 11 : i64} {
  func.func @fused_decoder_kernel(%arg0: i32, %arg1: memref<16x32xf32, #tpu.memory_space<vmem>>, %arg2: memref<16x32xf32, #tpu.memory_space<vmem>>, %arg3: memref<16x64xf32, #tpu.memory_space<vmem>>, %arg4: memref<16x64xf32, #tpu.memory_space<vmem>>, %arg5: memref<64x16xf32, #tpu.memory_space<vmem>>, %arg6: memref<64x32xf32, #tpu.memory_space<vmem>>, %arg7: memref<64x64xf32, #tpu.memory_space<vmem>>, %arg8: memref<16x64xf32, #tpu.memory_space<vmem>>, %arg9: memref<8x32x32xf32, #tpu.memory_space<vmem>>, %arg10: memref<8x32xf32, #tpu.memory_space<vmem>>, %arg11: memref<32x128xf32, #tpu.memory_space<vmem>>, %arg12: memref<1x128xf32, #tpu.memory_space<vmem>>, %arg13: memref<128x32xf32, #tpu.memory_space<vmem>>, %arg14: memref<1x32xf32, #tpu.memory_space<vmem>>, %arg15: memref<3x32xf32, #tpu.memory_space<vmem>>, %arg16: memref<3x32xf32, #tpu.memory_space<vmem>>, %arg17: memref<16x128xf32, #tpu.memory_space<vmem>>) attributes {dimension_semantics = [#tpu.dimension_semantics<arbitrary>], iteration_bounds = array<i64: 1>, scalar_prefetch = 0 : i64, scratch_operands = 0 : i64, tpu.core_type = #tpu.core_type<tc>, window_params = [{pipeline_mode = #tpu.pipeline_mode<synchronous>, transform_indices = @transform_0, window_bounds = array<i64: 16, 32>}, {pipeline_mode = #tpu.pipeline_mode<synchronous>, transform_indices = @transform_1, window_bounds = array<i64: 16, 32>}, {pipeline_mode = #tpu.pipeline_mode<synchronous>, transform_indices = @transform_2, window_bounds = array<i64: 16, 64>}, {pipeline_mode = #tpu.pipeline_mode<synchronous>, transform_indices = @transform_3, window_bounds = array<i64: 16, 64>}, {pipeline_mode = #tpu.pipeline_mode<synchronous>, transform_indices = @transform_4, window_bounds = array<i64: 64, 16>}, {pipeline_mode = #tpu.pipeline_mode<synchronous>, transform_indices = @transform_5, window_bounds = array<i64: 64, 32>}, {pipeline_mode = #tpu.pipeline_mode<synchronous>, transform_indices = @transform_6, window_bounds = array<i64: 64, 64>}, {pipeline_mode = #tpu.pipeline_mode<synchronous>, transform_indices = @transform_7, window_bounds = array<i64: 16, 64>}, {pipeline_mode = #tpu.pipeline_mode<synchronous>, transform_indices = @transform_8, window_bounds = array<i64: 8, 32, 32>}, {pipeline_mode = #tpu.pipeline_mode<synchronous>, transform_indices = @transform_9, window_bounds = array<i64: 8, 32>}, {pipeline_mode = #tpu.pipeline_mode<synchronous>, transform_indices = @transform_10, window_bounds = array<i64: 32, 128>}, {pipeline_mode = #tpu.pipeline_mode<synchronous>, transform_indices = @transform_11, window_bounds = array<i64: 1, 128>}, {pipeline_mode = #tpu.pipeline_mode<synchronous>, transform_indices = @transform_12, window_bounds = array<i64: 128, 32>}, {pipeline_mode = #tpu.pipeline_mode<synchronous>, transform_indices = @transform_13, window_bounds = array<i64: 1, 32>}, {pipeline_mode = #tpu.pipeline_mode<synchronous>, transform_indices = @transform_14, window_bounds = array<i64: 3, 32>}, {pipeline_mode = #tpu.pipeline_mode<synchronous>, transform_indices = @transform_15, window_bounds = array<i64: 3, 32>}, {pipeline_mode = #tpu.pipeline_mode<synchronous>, transform_indices = @transform_16, window_bounds = array<i64: 16, 128>}]} {
    %c0 = arith.constant 0 : index
    %c0_0 = arith.constant 0 : index
    %0 = vector.load %arg1[%c0, %c0_0] : memref<16x32xf32, #tpu.memory_space<vmem>>, vector<16x32xf32>
    %c0_1 = arith.constant 0 : index
    %c0_2 = arith.constant 0 : index
    %1 = vector.load %arg2[%c0_1, %c0_2] : memref<16x32xf32, #tpu.memory_space<vmem>>, vector<16x32xf32>
    %c0_3 = arith.constant 0 : index
    %c0_4 = arith.constant 0 : index
    %2 = vector.load %arg3[%c0_3, %c0_4] : memref<16x64xf32, #tpu.memory_space<vmem>>, vector<16x64xf32>
    %c0_5 = arith.constant 0 : index
    %c0_6 = arith.constant 0 : index
    %3 = vector.load %arg4[%c0_5, %c0_6] : memref<16x64xf32, #tpu.memory_space<vmem>>, vector<16x64xf32>
    %c0_7 = arith.constant 0 : index
    %c0_8 = arith.constant 0 : index
    %4 = vector.load %arg5[%c0_7, %c0_8] : memref<64x16xf32, #tpu.memory_space<vmem>>, vector<64x16xf32>
    %c0_9 = arith.constant 0 : index
    %c0_10 = arith.constant 0 : index
    %5 = vector.load %arg6[%c0_9, %c0_10] : memref<64x32xf32, #tpu.memory_space<vmem>>, vector<64x32xf32>
    %c0_11 = arith.constant 0 : index
    %c0_12 = arith.constant 0 : index
    %6 = vector.load %arg7[%c0_11, %c0_12] : memref<64x64xf32, #tpu.memory_space<vmem>>, vector<64x64xf32>
    %c0_13 = arith.constant 0 : index
    %c0_14 = arith.constant 0 : index
    %7 = vector.load %arg8[%c0_13, %c0_14] : memref<16x64xf32, #tpu.memory_space<vmem>>, vector<16x64xf32>
    %c0_15 = arith.constant 0 : index
    %c0_16 = arith.constant 0 : index
    %8 = vector.load %arg15[%c0_15, %c0_16] : memref<3x32xf32, #tpu.memory_space<vmem>>, vector<1x32xf32>
    %c0_17 = arith.constant 0 : index
    %c0_18 = arith.constant 0 : index
    %9 = vector.load %arg16[%c0_17, %c0_18] : memref<3x32xf32, #tpu.memory_space<vmem>>, vector<1x32xf32>
    %cst = arith.constant dense<0.000000e+00> : vector<16xf32>
    %10 = vector.multi_reduction <add>, %0, %cst [1] : vector<16x32xf32> to vector<16xf32>
    %11 = vector.shape_cast %10 : vector<16xf32> to vector<16x1xf32>
    %cst_19 = arith.constant 3.200000e+01 : f32
    %12 = vector.broadcast %cst_19 : f32 to vector<16x1xf32>
    %13 = arith.divf %11, %12 : vector<16x1xf32>
    %14 = arith.mulf %0, %0 : vector<16x32xf32>
    %cst_20 = arith.constant dense<0.000000e+00> : vector<16xf32>
    %15 = vector.multi_reduction <add>, %14, %cst_20 [1] : vector<16x32xf32> to vector<16xf32>
    %16 = vector.shape_cast %15 : vector<16xf32> to vector<16x1xf32>
    %cst_21 = arith.constant 3.200000e+01 : f32
    %17 = vector.broadcast %cst_21 : f32 to vector<16x1xf32>
    %18 = arith.divf %16, %17 : vector<16x1xf32>
    %19 = arith.mulf %13, %13 : vector<16x1xf32>
    %20 = arith.subf %18, %19 : vector<16x1xf32>
    %21 = vector.broadcast %13 : vector<16x1xf32> to vector<16x32xf32>
    %22 = arith.subf %0, %21 : vector<16x32xf32>
    %cst_22 = arith.constant 9.99999997E-7 : f32
    %23 = vector.broadcast %cst_22 : f32 to vector<16x1xf32>
    %24 = arith.addf %20, %23 : vector<16x1xf32>
    %25 = math.rsqrt %24 : vector<16x1xf32>
    %26 = vector.broadcast %25 : vector<16x1xf32> to vector<16x32xf32>
    %27 = arith.mulf %22, %26 : vector<16x32xf32>
    %28 = vector.broadcast %8 : vector<1x32xf32> to vector<16x32xf32>
    %29 = arith.mulf %27, %28 : vector<16x32xf32>
    %30 = vector.broadcast %9 : vector<1x32xf32> to vector<16x32xf32>
    %31 = arith.addf %29, %30 : vector<16x32xf32>
    %c0_23 = arith.constant 0 : index
    %c0_24 = arith.constant 0 : index
    %c0_25 = arith.constant 0 : index
    %32 = vector.load %arg9[%c0_23, %c0_24, %c0_25] : memref<8x32x32xf32, #tpu.memory_space<vmem>>, vector<1x32x32xf32>
    %33 = vector.shape_cast %32 : vector<1x32x32xf32> to vector<32x32xf32>
    %c1 = arith.constant 1 : index
    %c0_26 = arith.constant 0 : index
    %c0_27 = arith.constant 0 : index
    %34 = vector.load %arg9[%c1, %c0_26, %c0_27] : memref<8x32x32xf32, #tpu.memory_space<vmem>>, vector<1x32x32xf32>
    %35 = vector.shape_cast %34 : vector<1x32x32xf32> to vector<32x32xf32>
    %c2 = arith.constant 2 : index
    %c0_28 = arith.constant 0 : index
    %c0_29 = arith.constant 0 : index
    %36 = vector.load %arg9[%c2, %c0_28, %c0_29] : memref<8x32x32xf32, #tpu.memory_space<vmem>>, vector<1x32x32xf32>
    %37 = vector.shape_cast %36 : vector<1x32x32xf32> to vector<32x32xf32>
    %c3 = arith.constant 3 : index
    %c0_30 = arith.constant 0 : index
    %c0_31 = arith.constant 0 : index
    %38 = vector.load %arg9[%c3, %c0_30, %c0_31] : memref<8x32x32xf32, #tpu.memory_space<vmem>>, vector<1x32x32xf32>
    %39 = vector.shape_cast %38 : vector<1x32x32xf32> to vector<32x32xf32>
    %c0_32 = arith.constant 0 : index
    %c0_33 = arith.constant 0 : index
    %40 = vector.load %arg10[%c0_32, %c0_33] : memref<8x32xf32, #tpu.memory_space<vmem>>, vector<1x32xf32>
    %c1_34 = arith.constant 1 : index
    %c0_35 = arith.constant 0 : index
    %41 = vector.load %arg10[%c1_34, %c0_35] : memref<8x32xf32, #tpu.memory_space<vmem>>, vector<1x32xf32>
    %c2_36 = arith.constant 2 : index
    %c0_37 = arith.constant 0 : index
    %42 = vector.load %arg10[%c2_36, %c0_37] : memref<8x32xf32, #tpu.memory_space<vmem>>, vector<1x32xf32>
    %c3_38 = arith.constant 3 : index
    %c0_39 = arith.constant 0 : index
    %43 = vector.load %arg10[%c3_38, %c0_39] : memref<8x32xf32, #tpu.memory_space<vmem>>, vector<1x32xf32>
    %cst_40 = arith.constant dense<0.000000e+00> : vector<64x32xf32>
    %44 = tpu.matmul %4, %31, %cst_40 {dimension_numbers = #tpu.dot_dimension_numbers<[1], [0], [0], [1], [0, 0, 1, 1], [], []>} : vector<64x16xf32>, vector<16x32xf32>, vector<64x32xf32> -> vector<64x32xf32>
    %cst_41 = arith.constant dense<0.000000e+00> : vector<16x32xf32>
    %45 = tpu.matmul %31, %33, %cst_41 {dimension_numbers = #tpu.dot_dimension_numbers<[1], [0], [0], [1], [0, 0, 1, 1], [], []>} : vector<16x32xf32>, vector<32x32xf32>, vector<16x32xf32> -> vector<16x32xf32>
    %46 = vector.broadcast %40 : vector<1x32xf32> to vector<16x32xf32>
    %47 = arith.addf %45, %46 : vector<16x32xf32>
    %cst_42 = arith.constant dense<0.000000e+00> : vector<64x32xf32>
    %48 = tpu.matmul %44, %35, %cst_42 {dimension_numbers = #tpu.dot_dimension_numbers<[1], [0], [0], [1], [0, 0, 1, 1], [], []>} : vector<64x32xf32>, vector<32x32xf32>, vector<64x32xf32> -> vector<64x32xf32>
    %49 = vector.broadcast %41 : vector<1x32xf32> to vector<64x32xf32>
    %50 = arith.addf %48, %49 : vector<64x32xf32>
    %51 = arith.mulf %50, %5 : vector<64x32xf32>
    %cst_43 = arith.constant dense<0.000000e+00> : vector<64x32xf32>
    %52 = tpu.matmul %44, %37, %cst_43 {dimension_numbers = #tpu.dot_dimension_numbers<[1], [0], [0], [1], [0, 0, 1, 1], [], []>} : vector<64x32xf32>, vector<32x32xf32>, vector<64x32xf32> -> vector<64x32xf32>
    %53 = vector.broadcast %42 : vector<1x32xf32> to vector<64x32xf32>
    %54 = arith.addf %52, %53 : vector<64x32xf32>
    %55 = arith.mulf %54, %5 : vector<64x32xf32>
    %cst_44 = arith.constant dense<0.000000e+00> : vector<16x64xf32>
    %56 = tpu.matmul %47, %51, %cst_44 {dimension_numbers = #tpu.dot_dimension_numbers<[1], [1], [0], [0], [0, 0, 1, 0], [], []>} : vector<16x32xf32>, vector<64x32xf32>, vector<16x64xf32> -> vector<16x64xf32>
    %cst_45 = arith.constant 0.353553385 : f32
    %57 = vector.broadcast %cst_45 : f32 to vector<16x64xf32>
    %58 = arith.mulf %56, %57 : vector<16x64xf32>
    %59 = arith.addf %58, %2 : vector<16x64xf32>
    %cst_46 = arith.constant dense<0xFF800000> : vector<16xf32>
    %60 = vector.multi_reduction <maximumf>, %59, %cst_46 [1] : vector<16x64xf32> to vector<16xf32>
    %61 = vector.shape_cast %60 : vector<16xf32> to vector<16x1xf32>
    %62 = vector.broadcast %61 : vector<16x1xf32> to vector<16x64xf32>
    %63 = arith.subf %59, %62 : vector<16x64xf32>
    %64 = math.exp %63 : vector<16x64xf32>
    %cst_47 = arith.constant dense<0.000000e+00> : vector<16x64xf32>
    %65 = tpu.matmul %64, %6, %cst_47 {dimension_numbers = #tpu.dot_dimension_numbers<[1], [0], [0], [1], [0, 0, 1, 1], [], []>} : vector<16x64xf32>, vector<64x64xf32>, vector<16x64xf32> -> vector<16x64xf32>
    %66 = tpu.reciprocal %65 {approx = true} : vector<16x64xf32> -> vector<16x64xf32>
    %67 = arith.mulf %64, %66 : vector<16x64xf32>
    %68 = arith.mulf %67, %7 : vector<16x64xf32>
    %cst_48 = arith.constant dense<0.000000e+00> : vector<16x32xf32>
    %69 = tpu.matmul %68, %55, %cst_48 {dimension_numbers = #tpu.dot_dimension_numbers<[1], [0], [0], [1], [0, 0, 1, 1], [], []>} : vector<16x64xf32>, vector<64x32xf32>, vector<16x32xf32> -> vector<16x32xf32>
    %cst_49 = arith.constant dense<0.000000e+00> : vector<16x32xf32>
    %70 = tpu.matmul %69, %39, %cst_49 {dimension_numbers = #tpu.dot_dimension_numbers<[1], [0], [0], [1], [0, 0, 1, 1], [], []>} : vector<16x32xf32>, vector<32x32xf32>, vector<16x32xf32> -> vector<16x32xf32>
    %71 = vector.broadcast %43 : vector<1x32xf32> to vector<16x32xf32>
    %72 = arith.addf %70, %71 : vector<16x32xf32>
    %73 = arith.addf %0, %72 : vector<16x32xf32>
    %c1_50 = arith.constant 1 : index
    %c0_51 = arith.constant 0 : index
    %74 = vector.load %arg15[%c1_50, %c0_51] : memref<3x32xf32, #tpu.memory_space<vmem>>, vector<1x32xf32>
    %c1_52 = arith.constant 1 : index
    %c0_53 = arith.constant 0 : index
    %75 = vector.load %arg16[%c1_52, %c0_53] : memref<3x32xf32, #tpu.memory_space<vmem>>, vector<1x32xf32>
    %cst_54 = arith.constant dense<0.000000e+00> : vector<16xf32>
    %76 = vector.multi_reduction <add>, %73, %cst_54 [1] : vector<16x32xf32> to vector<16xf32>
    %77 = vector.shape_cast %76 : vector<16xf32> to vector<16x1xf32>
    %cst_55 = arith.constant 3.200000e+01 : f32
    %78 = vector.broadcast %cst_55 : f32 to vector<16x1xf32>
    %79 = arith.divf %77, %78 : vector<16x1xf32>
    %80 = arith.mulf %73, %73 : vector<16x32xf32>
    %cst_56 = arith.constant dense<0.000000e+00> : vector<16xf32>
    %81 = vector.multi_reduction <add>, %80, %cst_56 [1] : vector<16x32xf32> to vector<16xf32>
    %82 = vector.shape_cast %81 : vector<16xf32> to vector<16x1xf32>
    %cst_57 = arith.constant 3.200000e+01 : f32
    %83 = vector.broadcast %cst_57 : f32 to vector<16x1xf32>
    %84 = arith.divf %82, %83 : vector<16x1xf32>
    %85 = arith.mulf %79, %79 : vector<16x1xf32>
    %86 = arith.subf %84, %85 : vector<16x1xf32>
    %87 = vector.broadcast %79 : vector<16x1xf32> to vector<16x32xf32>
    %88 = arith.subf %73, %87 : vector<16x32xf32>
    %cst_58 = arith.constant 9.99999997E-7 : f32
    %89 = vector.broadcast %cst_58 : f32 to vector<16x1xf32>
    %90 = arith.addf %86, %89 : vector<16x1xf32>
    %91 = math.rsqrt %90 : vector<16x1xf32>
    %92 = vector.broadcast %91 : vector<16x1xf32> to vector<16x32xf32>
    %93 = arith.mulf %88, %92 : vector<16x32xf32>
    %94 = vector.broadcast %74 : vector<1x32xf32> to vector<16x32xf32>
    %95 = arith.mulf %93, %94 : vector<16x32xf32>
    %96 = vector.broadcast %75 : vector<1x32xf32> to vector<16x32xf32>
    %97 = arith.addf %95, %96 : vector<16x32xf32>
    %c4 = arith.constant 4 : index
    %c0_59 = arith.constant 0 : index
    %c0_60 = arith.constant 0 : index
    %98 = vector.load %arg9[%c4, %c0_59, %c0_60] : memref<8x32x32xf32, #tpu.memory_space<vmem>>, vector<1x32x32xf32>
    %99 = vector.shape_cast %98 : vector<1x32x32xf32> to vector<32x32xf32>
    %c5 = arith.constant 5 : index
    %c0_61 = arith.constant 0 : index
    %c0_62 = arith.constant 0 : index
    %100 = vector.load %arg9[%c5, %c0_61, %c0_62] : memref<8x32x32xf32, #tpu.memory_space<vmem>>, vector<1x32x32xf32>
    %101 = vector.shape_cast %100 : vector<1x32x32xf32> to vector<32x32xf32>
    %c6 = arith.constant 6 : index
    %c0_63 = arith.constant 0 : index
    %c0_64 = arith.constant 0 : index
    %102 = vector.load %arg9[%c6, %c0_63, %c0_64] : memref<8x32x32xf32, #tpu.memory_space<vmem>>, vector<1x32x32xf32>
    %103 = vector.shape_cast %102 : vector<1x32x32xf32> to vector<32x32xf32>
    %c7 = arith.constant 7 : index
    %c0_65 = arith.constant 0 : index
    %c0_66 = arith.constant 0 : index
    %104 = vector.load %arg9[%c7, %c0_65, %c0_66] : memref<8x32x32xf32, #tpu.memory_space<vmem>>, vector<1x32x32xf32>
    %105 = vector.shape_cast %104 : vector<1x32x32xf32> to vector<32x32xf32>
    %c4_67 = arith.constant 4 : index
    %c0_68 = arith.constant 0 : index
    %106 = vector.load %arg10[%c4_67, %c0_68] : memref<8x32xf32, #tpu.memory_space<vmem>>, vector<1x32xf32>
    %c5_69 = arith.constant 5 : index
    %c0_70 = arith.constant 0 : index
    %107 = vector.load %arg10[%c5_69, %c0_70] : memref<8x32xf32, #tpu.memory_space<vmem>>, vector<1x32xf32>
    %c6_71 = arith.constant 6 : index
    %c0_72 = arith.constant 0 : index
    %108 = vector.load %arg10[%c6_71, %c0_72] : memref<8x32xf32, #tpu.memory_space<vmem>>, vector<1x32xf32>
    %c7_73 = arith.constant 7 : index
    %c0_74 = arith.constant 0 : index
    %109 = vector.load %arg10[%c7_73, %c0_74] : memref<8x32xf32, #tpu.memory_space<vmem>>, vector<1x32xf32>
    %cst_75 = arith.constant dense<0.000000e+00> : vector<64x32xf32>
    %110 = tpu.matmul %4, %1, %cst_75 {dimension_numbers = #tpu.dot_dimension_numbers<[1], [0], [0], [1], [0, 0, 1, 1], [], []>} : vector<64x16xf32>, vector<16x32xf32>, vector<64x32xf32> -> vector<64x32xf32>
    %cst_76 = arith.constant dense<0.000000e+00> : vector<16x32xf32>
    %111 = tpu.matmul %97, %99, %cst_76 {dimension_numbers = #tpu.dot_dimension_numbers<[1], [0], [0], [1], [0, 0, 1, 1], [], []>} : vector<16x32xf32>, vector<32x32xf32>, vector<16x32xf32> -> vector<16x32xf32>
    %112 = vector.broadcast %106 : vector<1x32xf32> to vector<16x32xf32>
    %113 = arith.addf %111, %112 : vector<16x32xf32>
    %cst_77 = arith.constant dense<0.000000e+00> : vector<64x32xf32>
    %114 = tpu.matmul %110, %101, %cst_77 {dimension_numbers = #tpu.dot_dimension_numbers<[1], [0], [0], [1], [0, 0, 1, 1], [], []>} : vector<64x32xf32>, vector<32x32xf32>, vector<64x32xf32> -> vector<64x32xf32>
    %115 = vector.broadcast %107 : vector<1x32xf32> to vector<64x32xf32>
    %116 = arith.addf %114, %115 : vector<64x32xf32>
    %117 = arith.mulf %116, %5 : vector<64x32xf32>
    %cst_78 = arith.constant dense<0.000000e+00> : vector<64x32xf32>
    %118 = tpu.matmul %110, %103, %cst_78 {dimension_numbers = #tpu.dot_dimension_numbers<[1], [0], [0], [1], [0, 0, 1, 1], [], []>} : vector<64x32xf32>, vector<32x32xf32>, vector<64x32xf32> -> vector<64x32xf32>
    %119 = vector.broadcast %108 : vector<1x32xf32> to vector<64x32xf32>
    %120 = arith.addf %118, %119 : vector<64x32xf32>
    %121 = arith.mulf %120, %5 : vector<64x32xf32>
    %cst_79 = arith.constant dense<0.000000e+00> : vector<16x64xf32>
    %122 = tpu.matmul %113, %117, %cst_79 {dimension_numbers = #tpu.dot_dimension_numbers<[1], [1], [0], [0], [0, 0, 1, 0], [], []>} : vector<16x32xf32>, vector<64x32xf32>, vector<16x64xf32> -> vector<16x64xf32>
    %cst_80 = arith.constant 0.353553385 : f32
    %123 = vector.broadcast %cst_80 : f32 to vector<16x64xf32>
    %124 = arith.mulf %122, %123 : vector<16x64xf32>
    %125 = arith.addf %124, %3 : vector<16x64xf32>
    %cst_81 = arith.constant dense<0xFF800000> : vector<16xf32>
    %126 = vector.multi_reduction <maximumf>, %125, %cst_81 [1] : vector<16x64xf32> to vector<16xf32>
    %127 = vector.shape_cast %126 : vector<16xf32> to vector<16x1xf32>
    %128 = vector.broadcast %127 : vector<16x1xf32> to vector<16x64xf32>
    %129 = arith.subf %125, %128 : vector<16x64xf32>
    %130 = math.exp %129 : vector<16x64xf32>
    %cst_82 = arith.constant dense<0.000000e+00> : vector<16x64xf32>
    %131 = tpu.matmul %130, %6, %cst_82 {dimension_numbers = #tpu.dot_dimension_numbers<[1], [0], [0], [1], [0, 0, 1, 1], [], []>} : vector<16x64xf32>, vector<64x64xf32>, vector<16x64xf32> -> vector<16x64xf32>
    %132 = arith.divf %130, %131 : vector<16x64xf32>
    %133 = arith.mulf %132, %7 : vector<16x64xf32>
    %cst_83 = arith.constant dense<0.000000e+00> : vector<16x32xf32>
    %134 = tpu.matmul %133, %121, %cst_83 {dimension_numbers = #tpu.dot_dimension_numbers<[1], [0], [0], [1], [0, 0, 1, 1], [], []>} : vector<16x64xf32>, vector<64x32xf32>, vector<16x32xf32> -> vector<16x32xf32>
    %cst_84 = arith.constant dense<0.000000e+00> : vector<16x32xf32>
    %135 = tpu.matmul %134, %105, %cst_84 {dimension_numbers = #tpu.dot_dimension_numbers<[1], [0], [0], [1], [0, 0, 1, 1], [], []>} : vector<16x32xf32>, vector<32x32xf32>, vector<16x32xf32> -> vector<16x32xf32>
    %136 = vector.broadcast %109 : vector<1x32xf32> to vector<16x32xf32>
    %137 = arith.addf %135, %136 : vector<16x32xf32>
    %138 = arith.addf %73, %137 : vector<16x32xf32>
    %c2_85 = arith.constant 2 : index
    %c0_86 = arith.constant 0 : index
    %139 = vector.load %arg15[%c2_85, %c0_86] : memref<3x32xf32, #tpu.memory_space<vmem>>, vector<1x32xf32>
    %c2_87 = arith.constant 2 : index
    %c0_88 = arith.constant 0 : index
    %140 = vector.load %arg16[%c2_87, %c0_88] : memref<3x32xf32, #tpu.memory_space<vmem>>, vector<1x32xf32>
    %cst_89 = arith.constant dense<0.000000e+00> : vector<16xf32>
    %141 = vector.multi_reduction <add>, %138, %cst_89 [1] : vector<16x32xf32> to vector<16xf32>
    %142 = vector.shape_cast %141 : vector<16xf32> to vector<16x1xf32>
    %cst_90 = arith.constant 3.200000e+01 : f32
    %143 = vector.broadcast %cst_90 : f32 to vector<16x1xf32>
    %144 = arith.divf %142, %143 : vector<16x1xf32>
    %145 = arith.mulf %138, %138 : vector<16x32xf32>
    %cst_91 = arith.constant dense<0.000000e+00> : vector<16xf32>
    %146 = vector.multi_reduction <add>, %145, %cst_91 [1] : vector<16x32xf32> to vector<16xf32>
    %147 = vector.shape_cast %146 : vector<16xf32> to vector<16x1xf32>
    %cst_92 = arith.constant 3.200000e+01 : f32
    %148 = vector.broadcast %cst_92 : f32 to vector<16x1xf32>
    %149 = arith.divf %147, %148 : vector<16x1xf32>
    %150 = arith.mulf %144, %144 : vector<16x1xf32>
    %151 = arith.subf %149, %150 : vector<16x1xf32>
    %152 = vector.broadcast %144 : vector<16x1xf32> to vector<16x32xf32>
    %153 = arith.subf %138, %152 : vector<16x32xf32>
    %cst_93 = arith.constant 9.99999997E-7 : f32
    %154 = vector.broadcast %cst_93 : f32 to vector<16x1xf32>
    %155 = arith.addf %151, %154 : vector<16x1xf32>
    %156 = math.rsqrt %155 : vector<16x1xf32>
    %157 = vector.broadcast %156 : vector<16x1xf32> to vector<16x32xf32>
    %158 = arith.mulf %153, %157 : vector<16x32xf32>
    %159 = vector.broadcast %139 : vector<1x32xf32> to vector<16x32xf32>
    %160 = arith.mulf %158, %159 : vector<16x32xf32>
    %161 = vector.broadcast %140 : vector<1x32xf32> to vector<16x32xf32>
    %162 = arith.addf %160, %161 : vector<16x32xf32>
    %c0_94 = arith.constant 0 : index
    %c0_95 = arith.constant 0 : index
    %163 = vector.load %arg11[%c0_94, %c0_95] : memref<32x128xf32, #tpu.memory_space<vmem>>, vector<32x128xf32>
    %cst_96 = arith.constant dense<0.000000e+00> : vector<16x128xf32>
    %164 = tpu.matmul %162, %163, %cst_96 {dimension_numbers = #tpu.dot_dimension_numbers<[1], [0], [0], [1], [0, 0, 1, 1], [], []>} : vector<16x32xf32>, vector<32x128xf32>, vector<16x128xf32> -> vector<16x128xf32>
    %c0_97 = arith.constant 0 : index
    %c0_98 = arith.constant 0 : index
    %165 = vector.load %arg12[%c0_97, %c0_98] : memref<1x128xf32, #tpu.memory_space<vmem>>, vector<1x128xf32>
    %166 = vector.broadcast %165 : vector<1x128xf32> to vector<16x128xf32>
    %167 = arith.addf %164, %166 : vector<16x128xf32>
    %cst_99 = arith.constant 0.000000e+00 : f32
    %168 = vector.broadcast %cst_99 : f32 to vector<16x128xf32>
    %169 = arith.maximumf %167, %168 : vector<16x128xf32>
    %c0_100 = arith.constant 0 : index
    %c0_101 = arith.constant 0 : index
    %170 = vector.load %arg13[%c0_100, %c0_101] : memref<128x32xf32, #tpu.memory_space<vmem>>, vector<128x32xf32>
    %cst_102 = arith.constant dense<0.000000e+00> : vector<16x32xf32>
    %171 = tpu.matmul %169, %170, %cst_102 {dimension_numbers = #tpu.dot_dimension_numbers<[1], [0], [0], [1], [0, 0, 1, 1], [], []>} : vector<16x128xf32>, vector<128x32xf32>, vector<16x32xf32> -> vector<16x32xf32>
    %172 = arith.addf %138, %171 : vector<16x32xf32>
    %c0_103 = arith.constant 0 : index
    %c0_104 = arith.constant 0 : index
    %173 = vector.load %arg14[%c0_103, %c0_104] : memref<1x32xf32, #tpu.memory_space<vmem>>, vector<1x32xf32>
    %174 = vector.broadcast %173 : vector<1x32xf32> to vector<16x32xf32>
    %175 = arith.addf %172, %174 : vector<16x32xf32>
    %c0_105 = arith.constant 0 : index
    %c0_106 = arith.constant 0 : index
    %176 = vector.load %arg17[%c0_105, %c0_106] : memref<16x128xf32, #tpu.memory_space<vmem>>, vector<16x32xf32>
    tpu.vector_store %arg17[%c0_105, %c0_106], %175 {strides = array<i32>} : memref<16x128xf32, #tpu.memory_space<vmem>>, vector<16x32xf32>,
    %c0_107 = arith.constant 0 : index
    %c32 = arith.constant 32 : index
    %177 = vector.load %arg17[%c0_107, %c32] : memref<16x128xf32, #tpu.memory_space<vmem>>, vector<16x64xf32>
    tpu.vector_store %arg17[%c0_107, %c32], %133 {strides = array<i32>} : memref<16x128xf32, #tpu.memory_space<vmem>>, vector<16x64xf32>,
    %cst_108 = arith.constant 0.000000e+00 : f32
    %178 = vector.broadcast %cst_108 : f32 to vector<16x32xf32>
    %c0_109 = arith.constant 0 : index
    %c96 = arith.constant 96 : index
    %179 = vector.load %arg17[%c0_109, %c96] : memref<16x128xf32, #tpu.memory_space<vmem>>, vector<16x32xf32>
    tpu.vector_store %arg17[%c0_109, %c96], %178 {strides = array<i32>} : memref<16x128xf32, #tpu.memory_space<vmem>>, vector<16x32xf32>,
    return
  }
  func.func @transform_0(%arg0: i32) -> (i32, i32) {
    %c0_i32 = arith.constant 0 : i32
    %c0_i32_0 = arith.constant 0 : i32
    %c0_i32_1 = arith.constant 0 : i32
    return %c0_i32, %c0_i32_0 : i32, i32
  }
  func.func @transform_1(%arg0: i32) -> (i32, i32) {
    %c0_i32 = arith.constant 0 : i32
    %c0_i32_0 = arith.constant 0 : i32
    %c0_i32_1 = arith.constant 0 : i32
    return %c0_i32, %c0_i32_0 : i32, i32
  }
  func.func @transform_2(%arg0: i32) -> (i32, i32) {
    %c0_i32 = arith.constant 0 : i32
    %c0_i32_0 = arith.constant 0 : i32
    %c0_i32_1 = arith.constant 0 : i32
    return %c0_i32, %c0_i32_0 : i32, i32
  }
  func.func @transform_3(%arg0: i32) -> (i32, i32) {
    %c0_i32 = arith.constant 0 : i32
    %c0_i32_0 = arith.constant 0 : i32
    %c0_i32_1 = arith.constant 0 : i32
    return %c0_i32, %c0_i32_0 : i32, i32
  }
  func.func @transform_4(%arg0: i32) -> (i32, i32) {
    %c0_i32 = arith.constant 0 : i32
    %c0_i32_0 = arith.constant 0 : i32
    %c0_i32_1 = arith.constant 0 : i32
    return %c0_i32, %c0_i32_0 : i32, i32
  }
  func.func @transform_5(%arg0: i32) -> (i32, i32) {
    %c0_i32 = arith.constant 0 : i32
    %c0_i32_0 = arith.constant 0 : i32
    %c0_i32_1 = arith.constant 0 : i32
    return %c0_i32, %c0_i32_0 : i32, i32
  }
  func.func @transform_6(%arg0: i32) -> (i32, i32) {
    %c0_i32 = arith.constant 0 : i32
    %c0_i32_0 = arith.constant 0 : i32
    %c0_i32_1 = arith.constant 0 : i32
    return %c0_i32, %c0_i32_0 : i32, i32
  }
  func.func @transform_7(%arg0: i32) -> (i32, i32) {
    %c0_i32 = arith.constant 0 : i32
    %c0_i32_0 = arith.constant 0 : i32
    %c0_i32_1 = arith.constant 0 : i32
    return %c0_i32, %c0_i32_0 : i32, i32
  }
  func.func @transform_8(%arg0: i32) -> (i32, i32, i32) {
    %c0_i32 = arith.constant 0 : i32
    %c0_i32_0 = arith.constant 0 : i32
    %c0_i32_1 = arith.constant 0 : i32
    %c0_i32_2 = arith.constant 0 : i32
    return %c0_i32, %c0_i32_0, %c0_i32_1 : i32, i32, i32
  }
  func.func @transform_9(%arg0: i32) -> (i32, i32) {
    %c0_i32 = arith.constant 0 : i32
    %c0_i32_0 = arith.constant 0 : i32
    %c0_i32_1 = arith.constant 0 : i32
    return %c0_i32, %c0_i32_0 : i32, i32
  }
  func.func @transform_10(%arg0: i32) -> (i32, i32) {
    %c0_i32 = arith.constant 0 : i32
    %c0_i32_0 = arith.constant 0 : i32
    %c0_i32_1 = arith.constant 0 : i32
    return %c0_i32, %c0_i32_0 : i32, i32
  }
  func.func @transform_11(%arg0: i32) -> (i32, i32) {
    %c0_i32 = arith.constant 0 : i32
    %c0_i32_0 = arith.constant 0 : i32
    %c0_i32_1 = arith.constant 0 : i32
    return %c0_i32, %c0_i32_0 : i32, i32
  }
  func.func @transform_12(%arg0: i32) -> (i32, i32) {
    %c0_i32 = arith.constant 0 : i32
    %c0_i32_0 = arith.constant 0 : i32
    %c0_i32_1 = arith.constant 0 : i32
    return %c0_i32, %c0_i32_0 : i32, i32
  }
  func.func @transform_13(%arg0: i32) -> (i32, i32) {
    %c0_i32 = arith.constant 0 : i32
    %c0_i32_0 = arith.constant 0 : i32
    %c0_i32_1 = arith.constant 0 : i32
    return %c0_i32, %c0_i32_0 : i32, i32
  }
  func.func @transform_14(%arg0: i32) -> (i32, i32) {
    %c0_i32 = arith.constant 0 : i32
    %c0_i32_0 = arith.constant 0 : i32
    %c0_i32_1 = arith.constant 0 : i32
    return %c0_i32, %c0_i32_0 : i32, i32
  }
  func.func @transform_15(%arg0: i32) -> (i32, i32) {
    %c0_i32 = arith.constant 0 : i32
    %c0_i32_0 = arith.constant 0 : i32
    %c0_i32_1 = arith.constant 0 : i32
    return %c0_i32, %c0_i32_0 : i32, i32
  }
  func.func @transform_16(%arg0: i32) -> (i32, i32) {
    %c0_i32 = arith.constant 0 : i32
    %c0_i32_0 = arith.constant 0 : i32
    %c0_i32_1 = arith.constant 0 : i32
    return %c0_i32, %c0_i32_0 : i32, i32
  }
}

</mosaic_0001>

<llo_original>
// kernel: mul.21
$region0: #{mul.21}
  %s0 = inlined_call_operand.vmem [shape: f32[2,8,4,8], index: 0, kind: input, shape index: {}]
  %s1 = inlined_call_operand.vmem [shape: f32[2,8,32], index: 1, kind: output, shape index: {}]
  $region1: #{mul.21} parent=0
    #allocation0 [shape = 'u8[65536]{0}', space=vmem, size = 0x10000, scoped, tag = 'scoped mem for input reshape']
    %s3 = sshllo.u32 0, 4
    %s4 = smul.addr 4, 15
    %s5 = scalar_lea.vmem %s0, %s4
    %v6 = vld [vmem:[%s5] sm:%s3]
    %s7 = scalar_lea.vmem [#allocation0], 120
    %8 = vst [vmem:[%s7] sm:%s3] %v6
    %s9 = smul.addr 4, 14
    %s10 = scalar_lea.vmem %s0, %s9
    %v11 = vld [vmem:[%s10] sm:%s3]
    %s12 = scalar_lea.vmem [#allocation0], 112
    %13 = vst [vmem:[%s12] sm:%s3] %v11
    %s14 = smul.addr 4, 13
    %s15 = scalar_lea.vmem %s0, %s14
    %v16 = vld [vmem:[%s15] sm:%s3]
    %s17 = scalar_lea.vmem [#allocation0], 104
    %18 = vst [vmem:[%s17] sm:%s3] %v16
    %s19 = smul.addr 4, 12
    %s20 = scalar_lea.vmem %s0, %s19
    %v21 = vld [vmem:[%s20] sm:%s3]
    %s22 = scalar_lea.vmem [#allocation0], 96
    %23 = vst [vmem:[%s22] sm:%s3] %v21
    %s24 = smul.addr 4, 11
    %s25 = scalar_lea.vmem %s0, %s24
    %v26 = vld [vmem:[%s25] sm:%s3]
    %s27 = scalar_lea.vmem [#allocation0], 88
    %28 = vst [vmem:[%s27] sm:%s3] %v26
    %s29 = smul.addr 4, 10
    %s30 = scalar_lea.vmem %s0, %s29
    %v31 = vld [vmem:[%s30] sm:%s3]
    %s32 = scalar_lea.vmem [#allocation0], 80
    %33 = vst [vmem:[%s32] sm:%s3] %v31
    %s34 = smul.addr 4, 9
    %s35 = scalar_lea.vmem %s0, %s34
    %v36 = vld [vmem:[%s35] sm:%s3]
    %s37 = scalar_lea.vmem [#allocation0], 72
    %38 = vst [vmem:[%s37] sm:%s3] %v36
    %s39 = smul.addr 4, 8
    %s40 = scalar_lea.vmem %s0, %s39
    %v41 = vld [vmem:[%s40] sm:%s3]
    %s42 = scalar_lea.vmem [#allocation0], 64
    %43 = vst [vmem:[%s42] sm:%s3] %v41
    %s44 = smul.addr 4, 7
    %s45 = scalar_lea.vmem %s0, %s44
    %v46 = vld [vmem:[%s45] sm:%s3]
    %s47 = scalar_lea.vmem [#allocation0], 56
    %48 = vst [vmem:[%s47] sm:%s3] %v46
    %s49 = smul.addr 4, 6
    %s50 = scalar_lea.vmem %s0, %s49
    %v51 = vld [vmem:[%s50] sm:%s3]
    %s52 = scalar_lea.vmem [#allocation0], 48
    %53 = vst [vmem:[%s52] sm:%s3] %v51
    %s54 = smul.addr 4, 5
    %s55 = scalar_lea.vmem %s0, %s54
    %v56 = vld [vmem:[%s55] sm:%s3]
    %s57 = scalar_lea.vmem [#allocation0], 40
    %58 = vst [vmem:[%s57] sm:%s3] %v56
    %s59 = smul.addr 4, 4
    %s60 = scalar_lea.vmem %s0, %s59
    %v61 = vld [vmem:[%s60] sm:%s3]
    %s62 = scalar_lea.vmem [#allocation0], 32
    %63 = vst [vmem:[%s62] sm:%s3] %v61
    %s64 = smul.addr 4, 3
    %s65 = scalar_lea.vmem %s0, %s64
    %v66 = vld [vmem:[%s65] sm:%s3]
    %s67 = scalar_lea.vmem [#allocation0], 24
    %68 = vst [vmem:[%s67] sm:%s3] %v66
    %s69 = smul.addr 4, 2
    %s70 = scalar_lea.vmem %s0, %s69
    %v71 = vld [vmem:[%s70] sm:%s3]
    %s72 = scalar_lea.vmem [#allocation0], 16
    %73 = vst [vmem:[%s72] sm:%s3] %v71
    %s74 = scalar_lea.vmem %s0, 4
    %v75 = vld [vmem:[%s74] sm:%s3]
    %s76 = scalar_lea.vmem [#allocation0], 8
    %77 = vst [vmem:[%s76] sm:%s3] %v75
    %v78 = vld [vmem:[%s0] sm:%s3]
    %79 = vst [vmem:[#allocation0] sm:%s3] %v78
    %v80 = vld [vmem:[#allocation0] ss:$8 sm:$0xf]
    %v81 = vld [vmem:[#allocation0] ss:$8 sm:$0xf0]
    %vm82 = vcmask 1047556
    %v83 = vsel %vm82, %v81, %v80
    %vm84 = vcmask 64512
    %85 = vst.msk [vmem:[%s1] sm:$0xff] %vm84, %v83
    %s86 = scalar_lea.vmem [#allocation0], 64
    %v87 = vld [vmem:[%s86] ss:$8 sm:$0xf]
    %s88 = scalar_lea.vmem [#allocation0], 64
    %v89 = vld [vmem:[%s88] ss:$8 sm:$0xf0]
    %vm90 = vcmask 1047556
    %v91 = vsel %vm90, %v89, %v87
    %vm92 = vcmask 64512
    %s93 = scalar_lea.vmem %s1, 8
    %94 = vst.msk [vmem:[%s93] sm:$0xff] %vm92, %v91
    %s95 = scalar_lea.vmem [#allocation0], 3
    %v96 = vld [vmem:[%s95] ss:$8 sm:$0xf]
    %s97 = scalar_lea.vmem [#allocation0], 3
    %v98 = vld [vmem:[%s97] ss:$8 sm:$0xf0]
    %vm99 = vcmask 1047556
    %v100 = vsel %vm99, %v98, %v96
    %101 = vrot.lane.b32.xlu0 %v100, 24
    %v102 = vpop.permute.xlu0 %101
    %vm103 = vcmask 261312
    %104 = vst.msk [vmem:[%s1] sm:$0xff] %vm103, %v102
    %s105 = scalar_lea.vmem [#allocation0], 67
    %v106 = vld [vmem:[%s105] ss:$8 sm:$0xf]
    %s107 = scalar_lea.vmem [#allocation0], 67
    %v108 = vld [vmem:[%s107] ss:$8 sm:$0xf0]
    %vm109 = vcmask 1047556
    %v110 = vsel %vm109, %v108, %v106
    %111 = vrot.lane.b32.xlu0 %v110, 24
    %v112 = vpop.permute.xlu0 %111
    %vm113 = vcmask 261312
    %s114 = scalar_lea.vmem %s1, 8
    %115 = vst.msk [vmem:[%s114] sm:$0xff] %vm113, %v112
    %s116 = scalar_lea.vmem [#allocation0], 2
    %v117 = vld [vmem:[%s116] ss:$8 sm:$0xf]
    %s118 = scalar_lea.vmem [#allocation0], 2
    %v119 = vld [vmem:[%s118] ss:$8 sm:$0xf0]
    %vm120 = vcmask 1047556
    %v121 = vsel %vm120, %v119, %v117
    %122 = vrot.lane.b32.xlu0 %v121, 16
    %v123 = vpop.permute.xlu0 %122
    %vm124 = vcmask 195712
    %125 = vst.msk [vmem:[%s1] sm:$0xff] %vm124, %v123
    %s126 = scalar_lea.vmem [#allocation0], 66
    %v127 = vld [vmem:[%s126] ss:$8 sm:$0xf]
    %s128 = scalar_lea.vmem [#allocation0], 66
    %v129 = vld [vmem:[%s128] ss:$8 sm:$0xf0]
    %vm130 = vcmask 1047556
    %v131 = vsel %vm130, %v129, %v127
    %132 = vrot.lane.b32.xlu0 %v131, 16
    %v133 = vpop.permute.xlu0 %132
    %vm134 = vcmask 195712
    %s135 = scalar_lea.vmem %s1, 8
    %136 = vst.msk [vmem:[%s135] sm:$0xff] %vm134, %v133
    %s137 = scalar_lea.vmem [#allocation0], 1
    %v138 = vld [vmem:[%s137] ss:$8 sm:$0xf]
    %s139 = scalar_lea.vmem [#allocation0], 1
    %v140 = vld [vmem:[%s139] ss:$8 sm:$0xf0]
    %vm141 = vcmask 1047556
    %v142 = vsel %vm141, %v140, %v138
    %143 = vrot.lane.b32.xlu0 %v142, 8
    %v144 = vpop.permute.xlu0 %143
    %vm145 = vcmask 130112
    %146 = vst.msk [vmem:[%s1] sm:$0xff] %vm145, %v144
    %s147 = scalar_lea.vmem [#allocation0], 65
    %v148 = vld [vmem:[%s147] ss:$8 sm:$0xf]
    %s149 = scalar_lea.vmem [#allocation0], 65
    %v150 = vld [vmem:[%s149] ss:$8 sm:$0xf0]
    %vm151 = vcmask 1047556
    %v152 = vsel %vm151, %v150, %v148
    %153 = vrot.lane.b32.xlu0 %v152, 8
    %v154 = vpop.permute.xlu0 %153
    %vm155 = vcmask 130112
    %s156 = scalar_lea.vmem %s1, 8
    %157 = vst.msk [vmem:[%s156] sm:$0xff] %vm155, %v154

// kernel: decoder_block.1
$region0: #{decoder_block.1}
  #allocation0 [shape = 'u32[]', space=smem, size = 0x4, offset = 0x4, fixed_abs, tag = 'smem constant byte address 0x4 - core index']
  #allocation1 [shape = 'u32[144,128]{1,0:T(1,128)}', space=vmem, size = 0x12000, scoped, tag = 'internal scratch']
  %s0 = inlined_call_operand.vmem [shape: f32[16,32], index: 0, kind: input, shape index: {}]
  %s1 = inlined_call_operand.vmem [shape: f32[16,32], index: 1, kind: input, shape index: {}]
  %s2 = inlined_call_operand.vmem [shape: f32[16,64], index: 2, kind: input, shape index: {}]
  %s3 = inlined_call_operand.vmem [shape: f32[16,64], index: 3, kind: input, shape index: {}]
  %s4 = inlined_call_operand.vmem [shape: f32[64,16], index: 4, kind: input, shape index: {}]
  %s5 = inlined_call_operand.vmem [shape: f32[64,32], index: 5, kind: input, shape index: {}]
  %s6 = inlined_call_operand.vmem [shape: f32[64,64], index: 6, kind: input, shape index: {}]
  %s7 = inlined_call_operand.vmem [shape: f32[16,64], index: 7, kind: input, shape index: {}]
  %s8 = inlined_call_operand.vmem [shape: f32[8,32,32], index: 8, kind: input, shape index: {}]
  %s9 = inlined_call_operand.vmem [shape: f32[8,32], index: 9, kind: input, shape index: {}]
  %s10 = inlined_call_operand.vmem [shape: f32[32,128], index: 10, kind: input, shape index: {}]
  %s11 = inlined_call_operand.vmem [shape: f32[1,128], index: 11, kind: input, shape index: {}]
  %s12 = inlined_call_operand.vmem [shape: f32[128,32], index: 12, kind: input, shape index: {}]
  %s13 = inlined_call_operand.vmem [shape: f32[1,32], index: 13, kind: input, shape index: {}]
  %s14 = inlined_call_operand.vmem [shape: f32[3,32], index: 14, kind: input, shape index: {}]
  %s15 = inlined_call_operand.vmem [shape: f32[3,32], index: 15, kind: input, shape index: {}]
  %s16 = inlined_call_operand.vmem [shape: f32[16,128], index: 16, kind: output, shape index: {}]
  %s17 = sld [smem:[#allocation0]]
  $region74: #{decoder_block.1} parent=0
    _
  %s19 = ssub.s32 1, %s17
  %s20 = scalar_select 0, %s19, %s17
  // Predicated region
  $region2: #{decoder_block.1} parent=0 // pred_check
    _
  $region3: #{decoder_block.1} parent=0 // pred_check_branch
    %22 = sbr.rel (0) target = $region5
  $region4: #{decoder_block.1} parent=0 // pred_region
    _
  $region5: #{decoder_block.1} parent=0 // pred_fallthru
    _
  // Predicated region
  $region6: #{decoder_block.1} parent=0 // pred_check
    _
  $region7: #{decoder_block.1} parent=0 // pred_check_branch
    %24 = sbr.rel (0) target = $region9
  $region8: #{decoder_block.1} parent=0 // pred_region
    _
  $region9: #{decoder_block.1} parent=0 // pred_fallthru
    _
  // Predicated region
  $region10: #{decoder_block.1} parent=0 // pred_check
    _
  $region11: #{decoder_block.1} parent=0 // pred_check_branch
    %26 = sbr.rel (0) target = $region13
  $region12: #{decoder_block.1} parent=0 // pred_region
    _
  $region13: #{decoder_block.1} parent=0 // pred_fallthru
    _
  // Predicated region
  $region14: #{decoder_block.1} parent=0 // pred_check
    _
  $region15: #{decoder_block.1} parent=0 // pred_check_branch
    %28 = sbr.rel (0) target = $region17
  $region16: #{decoder_block.1} parent=0 // pred_region
    _
  $region17: #{decoder_block.1} parent=0 // pred_fallthru
    _
  // Predicated region
  $region18: #{decoder_block.1} parent=0 // pred_check
    _
  $region19: #{decoder_block.1} parent=0 // pred_check_branch
    %30 = sbr.rel (0) target = $region21
  $region20: #{decoder_block.1} parent=0 // pred_region
    _
  $region21: #{decoder_block.1} parent=0 // pred_fallthru
    _
  // Predicated region
  $region22: #{decoder_block.1} parent=0 // pred_check
    _
  $region23: #{decoder_block.1} parent=0 // pred_check_branch
    %32 = sbr.rel (0) target = $region25
  $region24: #{decoder_block.1} parent=0 // pred_region
    _
  $region25: #{decoder_block.1} parent=0 // pred_fallthru
    _
  // Predicated region
  $region26: #{decoder_block.1} parent=0 // pred_check
    _
  $region27: #{decoder_block.1} parent=0 // pred_check_branch
    %34 = sbr.rel (0) target = $region29
  $region28: #{decoder_block.1} parent=0 // pred_region
    _
  $region29: #{decoder_block.1} parent=0 // pred_fallthru
    _
  // Predicated region
  $region30: #{decoder_block.1} parent=0 // pred_check
    _
  $region31: #{decoder_block.1} parent=0 // pred_check_branch
    %36 = sbr.rel (0) target = $region33
  $region32: #{decoder_block.1} parent=0 // pred_region
    _
  $region33: #{decoder_block.1} parent=0 // pred_fallthru
    _
  // Predicated region
  $region34: #{decoder_block.1} parent=0 // pred_check
    _
  $region35: #{decoder_block.1} parent=0 // pred_check_branch
    %38 = sbr.rel (0) target = $region37
  $region36: #{decoder_block.1} parent=0 // pred_region
    _
  $region37: #{decoder_block.1} parent=0 // pred_fallthru
    _
  // Predicated region
  $region38: #{decoder_block.1} parent=0 // pred_check
    _
  $region39: #{decoder_block.1} parent=0 // pred_check_branch
    %40 = sbr.rel (0) target = $region41
  $region40: #{decoder_block.1} parent=0 // pred_region
    _
  $region41: #{decoder_block.1} parent=0 // pred_fallthru
    _
  // Predicated region
  $region42: #{decoder_block.1} parent=0 // pred_check
    _
  $region43: #{decoder_block.1} parent=0 // pred_check_branch
    %42 = sbr.rel (0) target = $region45
  $region44: #{decoder_block.1} parent=0 // pred_region
    _
  $region45: #{decoder_block.1} parent=0 // pred_fallthru
    _
  // Predicated region
  $region46: #{decoder_block.1} parent=0 // pred_check
    _
  $region47: #{decoder_block.1} parent=0 // pred_check_branch
    %44 = sbr.rel (0) target = $region49
  $region48: #{decoder_block.1} parent=0 // pred_region
    _
  $region49: #{decoder_block.1} parent=0 // pred_fallthru
    _
  // Predicated region
  $region50: #{decoder_block.1} parent=0 // pred_check
    _
  $region51: #{decoder_block.1} parent=0 // pred_check_branch
    %46 = sbr.rel (0) target = $region53
  $region52: #{decoder_block.1} parent=0 // pred_region
    _
  $region53: #{decoder_block.1} parent=0 // pred_fallthru
    _
  // Predicated region
  $region54: #{decoder_block.1} parent=0 // pred_check
    _
  $region55: #{decoder_block.1} parent=0 // pred_check_branch
    %48 = sbr.rel (0) target = $region57
  $region56: #{decoder_block.1} parent=0 // pred_region
    _
  $region57: #{decoder_block.1} parent=0 // pred_fallthru
    _
  // Predicated region
  $region58: #{decoder_block.1} parent=0 // pred_check
    _
  $region59: #{decoder_block.1} parent=0 // pred_check_branch
    %50 = sbr.rel (0) target = $region61
  $region60: #{decoder_block.1} parent=0 // pred_region
    _
  $region61: #{decoder_block.1} parent=0 // pred_fallthru
    _
  // Predicated region
  $region62: #{decoder_block.1} parent=0 // pred_check
    _
  $region63: #{decoder_block.1} parent=0 // pred_check_branch
    %52 = sbr.rel (0) target = $region65
  $region64: #{decoder_block.1} parent=0 // pred_region
    _
  $region65: #{decoder_block.1} parent=0 // pred_fallthru
    _
  %v53 = vld [vmem:[%s0] sm:$0xff]
  %v54 = vld [vmem:[%s0 + $0x8] sm:$0xff]
  %v55 = vld [vmem:[%s1] sm:$0xff]
  %v56 = vld [vmem:[%s1 + $0x8] sm:$0xff]
  %v57 = vld [vmem:[%s2] sm:$0xff]
  %v58 = vld [vmem:[%s2 + $0x8] sm:$0xff]
  %v59 = vld [vmem:[%s3] sm:$0xff]
  %v60 = vld [vmem:[%s3 + $0x8] sm:$0xff]
  %v61 = vld [vmem:[%s4] sm:$0xff]
  %v62 = vld [vmem:[%s4 + $0x8] sm:$0xff]
  %v63 = vld [vmem:[%s4 + $0x10] sm:$0xff]
  %v64 = vld [vmem:[%s4 + $0x18] sm:$0xff]
  %v65 = vld [vmem:[%s4 + $0x20] sm:$0xff]
  %v66 = vld [vmem:[%s4 + $0x28] sm:$0xff]
  %v67 = vld [vmem:[%s4 + $0x30] sm:$0xff]
  %v68 = vld [vmem:[%s4 + $0x38] sm:$0xff]
  %v69 = vld [vmem:[%s5] sm:$0xff]
  %v70 = vld [vmem:[%s5 + $0x8] sm:$0xff]
  %v71 = vld [vmem:[%s5 + $0x10] sm:$0xff]
  %v72 = vld [vmem:[%s5 + $0x18] sm:$0xff]
  %v73 = vld [vmem:[%s5 + $0x20] sm:$0xff]
  %v74 = vld [vmem:[%s5 + $0x28] sm:$0xff]
  %v75 = vld [vmem:[%s5 + $0x30] sm:$0xff]
  %v76 = vld [vmem:[%s5 + $0x38] sm:$0xff]
  %v77 = vld [vmem:[%s6] sm:$0xff]
  %v78 = vld [vmem:[%s6 + $0x8] sm:$0xff]
  %v79 = vld [vmem:[%s6 + $0x10] sm:$0xff]
  %v80 = vld [vmem:[%s6 + $0x18] sm:$0xff]
  %v81 = vld [vmem:[%s6 + $0x20] sm:$0xff]
  %v82 = vld [vmem:[%s6 + $0x28] sm:$0xff]
  %v83 = vld [vmem:[%s6 + $0x30] sm:$0xff]
  %v84 = vld [vmem:[%s6 + $0x38] sm:$0xff]
  %v85 = vld [vmem:[%s7] sm:$0xff]
  %v86 = vld [vmem:[%s7 + $0x8] sm:$0xff]
  %v87 = vld [vmem:[%s14] sm:$0x1]
  %v88 = vld [vmem:[%s15] sm:$0x1]
  %vm89 = vcmask 261120
  %v90 = vsel %vm89, %v53, 0.0
  %91 = vadd.xlane.f32.xlu0 %v90
  %v92 = vpop.xlane.xlu0 %91
  %v93 = vsel %vm89, %v54, 0.0
  %94 = vadd.xlane.f32.xlu0 %v93
  %v95 = vpop.xlane.xlu0 %94
  %v96 = vrcp.pop 32.0
  %v97 = vmul.f32 %v92, %v96
  %v98 = vmul.f32 %v95, %v96
  %v99 = vmul.f32 %v53, %v53
  %v100 = vmul.f32 %v54, %v54
  %v101 = vsel %vm89, %v99, 0.0
  %102 = vadd.xlane.f32.xlu0 %v101
  %v103 = vpop.xlane.xlu0 %102
  %v104 = vsel %vm89, %v100, 0.0
  %105 = vadd.xlane.f32.xlu0 %v104
  %v106 = vpop.xlane.xlu0 %105
  %v107 = vmul.f32 %v103, %v96
  %v108 = vmul.f32 %v106, %v96
  %v109 = vmul.f32 %v97, %v97
  %v110 = vmul.f32 %v98, %v98
  %v111 = vsub.f32 %v107, %v109
  %v112 = vsub.f32 %v108, %v110
  %v113 = vsub.f32 %v53, %v97
  %v114 = vsub.f32 %v54, %v98
  %v115 = vadd.f32 %v111, 1e-06
  %v116 = vadd.f32 %v112, 1e-06
  %v117 = vrsqrt.pop %v115
  %v118 = vrsqrt.pop %v116
  %v119 = vmul.f32 %v113, %v117
  %v120 = vmul.f32 %v114, %v118
  %v121 = vlaneseq
  %v122 = vshrl.u32 %v121, 7
  %v123 = vsub.s32 0, %v122
  %v124 = vrot.slane %v87, %v123
  %v125 = vmul.f32 %v119, %v124
  %v126 = vmul.f32 %v120, %v124
  %v127 = vlaneseq
  %v128 = vshrl.u32 %v127, 7
  %v129 = vsub.s32 0, %v128
  %v130 = vrot.slane %v88, %v129
  %v131 = vadd.f32 %v125, %v130
  %v132 = vadd.f32 %v126, %v130
  %v133 = vld [vmem:[%s8] sm:$0xff]
  %v134 = vld [vmem:[%s8 + $0x8] sm:$0xff]
  %v135 = vld [vmem:[%s8 + $0x10] sm:$0xff]
  %v136 = vld [vmem:[%s8 + $0x18] sm:$0xff]
  %s137 = scalar_lea.vmem %s8, 32
  %v138 = vld [vmem:[%s137] sm:$0xff]
  %v139 = vld [vmem:[%s137 + $0x8] sm:$0xff]
  %v140 = vld [vmem:[%s137 + $0x10] sm:$0xff]
  %v141 = vld [vmem:[%s137 + $0x18] sm:$0xff]
  %s142 = scalar_lea.vmem %s8, 64
  %v143 = vld [vmem:[%s142] sm:$0xff]
  %v144 = vld [vmem:[%s142 + $0x8] sm:$0xff]
  %v145 = vld [vmem:[%s142 + $0x10] sm:$0xff]
  %v146 = vld [vmem:[%s142 + $0x18] sm:$0xff]
  %s147 = scalar_lea.vmem %s8, 96
  %v148 = vld [vmem:[%s147] sm:$0xff]
  %v149 = vld [vmem:[%s147 + $0x8] sm:$0xff]
  %v150 = vld [vmem:[%s147 + $0x10] sm:$0xff]
  %v151 = vld [vmem:[%s147 + $0x18] sm:$0xff]
  %v152 = vld [vmem:[%s9] sm:$0x1]
  %v153 = vld [vmem:[%s9 + $0x1] sm:$0x1]
  %v154 = vld [vmem:[%s9 + $0x2] sm:$0x1]
  %v155 = vld [vmem:[%s9 + $0x3] sm:$0x1]
  %vm156 = vcmask 130048
  %v158 = vsel %vm156, %v61, 0
  %v161 = vsel %vm156, %v62, 0
  %v164 = vsel %vm156, %v63, 0
  %v167 = vsel %vm156, %v64, 0
  %v170 = vsel %vm156, %v65, 0
  %v173 = vsel %vm156, %v66, 0
  %v176 = vsel %vm156, %v67, 0
  %v179 = vsel %vm156, %v68, 0
  %181 = vmatprep.subr.mxu0 0.0
  %182 = vmatpush1.msra.mxu0 %v131
  %183 = vmatprep.subr.mxu0 0.0
  %184 = vmatpush1.msra.mxu0 %v132
  %185 = vmatprep.subr.mxu0 0.0
  %186 = vmatpush1.msra.mxu0 0.0
  %187 = vmatprep.subr.mxu0 0.0
  %188 = vmatpush1.msra.mxu0 0.0
  %189 = vmatprep.subr.mxu0 0.0
  %190 = vmatpush1.msra.mxu0 0.0
  %191 = vmatprep.subr.mxu0 0.0
  %192 = vmatpush1.msra.mxu0 0.0
  %193 = vmatprep.subr.mxu0 0.0
  %194 = vmatpush1.msra.mxu0 0.0
  %195 = vmatprep.subr.mxu0 0.0
  %196 = vmatpush1.msra.mxu0 0.0
  %197 = vmatprep.subr.mxu0 0.0
  %198 = vmatpush1.msra.mxu0 0.0
  %199 = vmatprep.subr.mxu0 0.0
  %200 = vmatpush1.msra.mxu0 0.0
  %201 = vmatprep.subr.mxu0 0.0
  %202 = vmatpush1.msra.mxu0 0.0
  %203 = vmatprep.subr.mxu0 0.0
  %204 = vmatpush1.msra.mxu0 0.0
  %205 = vmatprep.subr.mxu0 0.0
  %206 = vmatpush1.msra.mxu0 0.0
  %207 = vmatprep.subr.mxu0 0.0
  %208 = vmatpush1.msra.mxu0 0.0
  %209 = vmatprep.subr.mxu0 0.0
  %210 = vmatpush1.msra.mxu0 0.0
  %211 = vmatprep.subr.mxu0 0.0
  %212 = vmatpush1.msra.mxu0 0.0
  %213 = vmatprep.subr.mxu0 0.0
  %214 = vmatpush1.msra.mxu0 0.0
  %215 = vmatprep.subr.mxu0 0.0
  %216 = vmatpush1.msra.mxu0 0.0
  %217 = vmatprep.subr.mxu0 0.0
  %218 = vmatpush1.msra.mxu0 0.0
  %219 = vmatprep.subr.mxu0 0.0
  %220 = vmatpush1.msra.mxu0 0.0
  %221 = vmatprep.subr.mxu0 0.0
  %222 = vmatpush1.msra.mxu0 0.0
  %223 = vmatprep.subr.mxu0 0.0
  %224 = vmatpush1.msra.mxu0 0.0
  %225 = vmatprep.subr.mxu0 0.0
  %226 = vmatpush1.msra.mxu0 0.0
  %227 = vmatprep.subr.mxu0 0.0
  %228 = vmatpush1.msra.mxu0 0.0
  %229 = vmatprep.subr.mxu0 0.0
  %230 = vmatpush1.msra.mxu0 0.0
  %231 = vmatprep.subr.mxu0 0.0
  %232 = vmatpush1.msra.mxu0 0.0
  %233 = vmatprep.subr.mxu0 0.0
  %234 = vmatpush1.msra.mxu0 0.0
  %235 = vmatprep.subr.mxu0 0.0
  %236 = vmatpush1.msra.mxu0 0.0
  %237 = vmatprep.subr.mxu0 0.0
  %238 = vmatpush1.msra.mxu0 0.0
  %239 = vmatprep.subr.mxu0 0.0
  %240 = vmatpush1.msra.mxu0 0.0
  %241 = vmatprep.subr.mxu0 0.0
  %242 = vmatpush1.msra.mxu0 0.0
  %243 = vmatprep.subr.mxu0 0.0
  %244 = vmatpush1.msra.mxu0 0.0
  %245 = vmatprep.mubr.f32.mxu0 0.0
  %246 = vmatmul.mubr.f32.gmra.mrb[0].mxu0 %v158
  %v247 = vpop.f32.mrb[0].mxu0
  %v248 = vadd.f32 0.0, %v247
  %v249 = vpop.f32.mrb[0].mxu0
  %250 = vmatprep.mubr.f32.mxu0 0.0
  %251 = vmatmul.mubr.f32.gmra.mrb[0].mxu0 %v161
  %v252 = vpop.f32.mrb[0].mxu0
  %v253 = vadd.f32 0.0, %v252
  %v254 = vpop.f32.mrb[0].mxu0
  %255 = vmatprep.mubr.f32.mxu0 0.0
  %256 = vmatmul.mubr.f32.gmra.mrb[0].mxu0 %v164
  %v257 = vpop.f32.mrb[0].mxu0
  %v258 = vadd.f32 0.0, %v257
  %v259 = vpop.f32.mrb[0].mxu0
  %260 = vmatprep.mubr.f32.mxu0 0.0
  %261 = vmatmul.mubr.f32.gmra.mrb[0].mxu0 %v167
  %v262 = vpop.f32.mrb[0].mxu0
  %v263 = vadd.f32 0.0, %v262
  %v264 = vpop.f32.mrb[0].mxu0
  %265 = vmatprep.mubr.f32.mxu0 0.0
  %266 = vmatmul.mubr.f32.gmra.mrb[0].mxu0 %v170
  %v267 = vpop.f32.mrb[0].mxu0
  %v268 = vadd.f32 0.0, %v267
  %v269 = vpop.f32.mrb[0].mxu0
  %270 = vmatprep.mubr.f32.mxu0 0.0
  %271 = vmatmul.mubr.f32.gmra.mrb[0].mxu0 %v173
  %v272 = vpop.f32.mrb[0].mxu0
  %v273 = vadd.f32 0.0, %v272
  %v274 = vpop.f32.mrb[0].mxu0
  %275 = vmatprep.mubr.f32.mxu0 0.0
  %276 = vmatmul.mubr.f32.gmra.mrb[0].mxu0 %v176
  %v277 = vpop.f32.mrb[0].mxu0
  %v278 = vadd.f32 0.0, %v277
  %v279 = vpop.f32.mrb[0].mxu0
  %280 = vmatprep.mubr.f32.mxu0 0.0
  %281 = vmatmul.mubr.f32.gmra.mrb[0].mxu0 %v179
  %v282 = vpop.f32.mrb[0].mxu0
  %v283 = vadd.f32 0.0, %v282
  %v284 = vpop.f32.mrb[0].mxu0
  %285 = vdwg.mxu0
  %v286 = vlaneseq
  %v287 = vshrl.u32 %v286, 7
  %v288 = vsub.s32 0, %v287
  %v289 = vrot.slane %v152, %v288
  %v291 = vsel %vm89, %v131, 0
  %v294 = vsel %vm89, %v132, 0
  %296 = vmatprep.subr.mxu0 0.0
  %297 = vmatpush1.msra.mxu0 %v133
  %298 = vmatprep.subr.mxu0 0.0
  %299 = vmatpush1.msra.mxu0 %v134
  %300 = vmatprep.subr.mxu0 0.0
  %301 = vmatpush1.msra.mxu0 %v135
  %302 = vmatprep.subr.mxu0 0.0
  %303 = vmatpush1.msra.mxu0 %v136
  %304 = vmatprep.subr.mxu0 0.0
  %305 = vmatpush1.msra.mxu0 0.0
  %306 = vmatprep.subr.mxu0 0.0
  %307 = vmatpush1.msra.mxu0 0.0
  %308 = vmatprep.subr.mxu0 0.0
  %309 = vmatpush1.msra.mxu0 0.0
  %310 = vmatprep.subr.mxu0 0.0
  %311 = vmatpush1.msra.mxu0 0.0
  %312 = vmatprep.subr.mxu0 0.0
  %313 = vmatpush1.msra.mxu0 0.0
  %314 = vmatprep.subr.mxu0 0.0
  %315 = vmatpush1.msra.mxu0 0.0
  %316 = vmatprep.subr.mxu0 0.0
  %317 = vmatpush1.msra.mxu0 0.0
  %318 = vmatprep.subr.mxu0 0.0
  %319 = vmatpush1.msra.mxu0 0.0
  %320 = vmatprep.subr.mxu0 0.0
  %321 = vmatpush1.msra.mxu0 0.0
  %322 = vmatprep.subr.mxu0 0.0
  %323 = vmatpush1.msra.mxu0 0.0
  %324 = vmatprep.subr.mxu0 0.0
  %325 = vmatpush1.msra.mxu0 0.0
  %326 = vmatprep.subr.mxu0 0.0
  %327 = vmatpush1.msra.mxu0 0.0
  %328 = vmatprep.subr.mxu0 0.0
  %329 = vmatpush1.msra.mxu0 0.0
  %330 = vmatprep.subr.mxu0 0.0
  %331 = vmatpush1.msra.mxu0 0.0
  %332 = vmatprep.subr.mxu0 0.0
  %333 = vmatpush1.msra.mxu0 0.0
  %334 = vmatprep.subr.mxu0 0.0
  %335 = vmatpush1.msra.mxu0 0.0
  %336 = vmatprep.subr.mxu0 0.0
  %337 = vmatpush1.msra.mxu0 0.0
  %338 = vmatprep.subr.mxu0 0.0
  %339 = vmatpush1.msra.mxu0 0.0
  %340 = vmatprep.subr.mxu0 0.0
  %341 = vmatpush1.msra.mxu0 0.0
  %342 = vmatprep.subr.mxu0 0.0
  %343 = vmatpush1.msra.mxu0 0.0
  %344 = vmatprep.subr.mxu0 0.0
  %345 = vmatpush1.msra.mxu0 0.0
  %346 = vmatprep.subr.mxu0 0.0
  %347 = vmatpush1.msra.mxu0 0.0
  %348 = vmatprep.subr.mxu0 0.0
  %349 = vmatpush1.msra.mxu0 0.0
  %350 = vmatprep.subr.mxu0 0.0
  %351 = vmatpush1.msra.mxu0 0.0
  %352 = vmatprep.subr.mxu0 0.0
  %353 = vmatpush1.msra.mxu0 0.0
  %354 = vmatprep.subr.mxu0 0.0
  %355 = vmatpush1.msra.mxu0 0.0
  %356 = vmatprep.subr.mxu0 0.0
  %357 = vmatpush1.msra.mxu0 0.0
  %358 = vmatprep.subr.mxu0 0.0
  %359 = vmatpush1.msra.mxu0 0.0
  %360 = vmatprep.mubr.f32.mxu0 0.0
  %361 = vmatmul.mubr.f32.gmra.mrb[0].mxu0 %v291
  %v362 = vpop.f32.mrb[0].mxu0
  %v363 = vadd.f32 %v289, %v362
  %v364 = vpop.f32.mrb[0].mxu0
  %365 = vmatprep.mubr.f32.mxu0 0.0
  %366 = vmatmul.mubr.f32.gmra.mrb[0].mxu0 %v294
  %v367 = vpop.f32.mrb[0].mxu0
  %v368 = vadd.f32 %v289, %v367
  %v369 = vpop.f32.mrb[0].mxu0
  %370 = vdwg.mxu0
  %v371 = vlaneseq
  %v372 = vshrl.u32 %v371, 7
  %v373 = vsub.s32 0, %v372
  %v374 = vrot.slane %v153, %v373
  %v376 = vsel %vm89, %v248, 0
  %v379 = vsel %vm89, %v253, 0
  %v382 = vsel %vm89, %v258, 0
  %v385 = vsel %vm89, %v263, 0
  %v388 = vsel %vm89, %v268, 0
  %v391 = vsel %vm89, %v273, 0
  %v394 = vsel %vm89, %v278, 0
  %v397 = vsel %vm89, %v283, 0
  %399 = vmatprep.subr.mxu0 0.0
  %400 = vmatpush1.msra.mxu0 %v138
  %401 = vmatprep.subr.mxu0 0.0
  %402 = vmatpush1.msra.mxu0 %v139
  %403 = vmatprep.subr.mxu0 0.0
  %404 = vmatpush1.msra.mxu0 %v140
  %405 = vmatprep.subr.mxu0 0.0
  %406 = vmatpush1.msra.mxu0 %v141
  %407 = vmatprep.subr.mxu0 0.0
  %408 = vmatpush1.msra.mxu0 0.0
  %409 = vmatprep.subr.mxu0 0.0
  %410 = vmatpush1.msra.mxu0 0.0
  %411 = vmatprep.subr.mxu0 0.0
  %412 = vmatpush1.msra.mxu0 0.0
  %413 = vmatprep.subr.mxu0 0.0
  %414 = vmatpush1.msra.mxu0 0.0
  %415 = vmatprep.subr.mxu0 0.0
  %416 = vmatpush1.msra.mxu0 0.0
  %417 = vmatprep.subr.mxu0 0.0
  %418 = vmatpush1.msra.mxu0 0.0
  %419 = vmatprep.subr.mxu0 0.0
  %420 = vmatpush1.msra.mxu0 0.0
  %421 = vmatprep.subr.mxu0 0.0
  %422 = vmatpush1.msra.mxu0 0.0
  %423 = vmatprep.subr.mxu0 0.0
  %424 = vmatpush1.msra.mxu0 0.0
  %425 = vmatprep.subr.mxu0 0.0
  %426 = vmatpush1.msra.mxu0 0.0
  %427 = vmatprep.subr.mxu0 0.0
  %428 = vmatpush1.msra.mxu0 0.0
  %429 = vmatprep.subr.mxu0 0.0
  %430 = vmatpush1.msra.mxu0 0.0
  %431 = vmatprep.subr.mxu0 0.0
  %432 = vmatpush1.msra.mxu0 0.0
  %433 = vmatprep.subr.mxu0 0.0
  %434 = vmatpush1.msra.mxu0 0.0
  %435 = vmatprep.subr.mxu0 0.0
  %436 = vmatpush1.msra.mxu0 0.0
  %437 = vmatprep.subr.mxu0 0.0
  %438 = vmatpush1.msra.mxu0 0.0
  %439 = vmatprep.subr.mxu0 0.0
  %440 = vmatpush1.msra.mxu0 0.0
  %441 = vmatprep.subr.mxu0 0.0
  %442 = vmatpush1.msra.mxu0 0.0
  %443 = vmatprep.subr.mxu0 0.0
  %444 = vmatpush1.msra.mxu0 0.0
  %445 = vmatprep.subr.mxu0 0.0
  %446 = vmatpush1.msra.mxu0 0.0
  %447 = vmatprep.subr.mxu0 0.0
  %448 = vmatpush1.msra.mxu0 0.0
  %449 = vmatprep.subr.mxu0 0.0
  %450 = vmatpush1.msra.mxu0 0.0
  %451 = vmatprep.subr.mxu0 0.0
  %452 = vmatpush1.msra.mxu0 0.0
  %453 = vmatprep.subr.mxu0 0.0
  %454 = vmatpush1.msra.mxu0 0.0
  %455 = vmatprep.subr.mxu0 0.0
  %456 = vmatpush1.msra.mxu0 0.0
  %457 = vmatprep.subr.mxu0 0.0
  %458 = vmatpush1.msra.mxu0 0.0
  %459 = vmatprep.subr.mxu0 0.0
  %460 = vmatpush1.msra.mxu0 0.0
  %461 = vmatprep.subr.mxu0 0.0
  %462 = vmatpush1.msra.mxu0 0.0
  %463 = vmatprep.mubr.f32.mxu0 0.0
  %464 = vmatmul.mubr.f32.gmra.mrb[0].mxu0 %v376
  %v465 = vpop.f32.mrb[0].mxu0
  %v466 = vadd.f32 %v374, %v465
  %v467 = vpop.f32.mrb[0].mxu0
  %468 = vmatprep.mubr.f32.mxu0 0.0
  %469 = vmatmul.mubr.f32.gmra.mrb[0].mxu0 %v379
  %v470 = vpop.f32.mrb[0].mxu0
  %v471 = vadd.f32 %v374, %v470
  %v472 = vpop.f32.mrb[0].mxu0
  %473 = vmatprep.mubr.f32.mxu0 0.0
  %474 = vmatmul.mubr.f32.gmra.mrb[0].mxu0 %v382
  %v475 = vpop.f32.mrb[0].mxu0
  %v476 = vadd.f32 %v374, %v475
  %v477 = vpop.f32.mrb[0].mxu0
  %478 = vmatprep.mubr.f32.mxu0 0.0
  %479 = vmatmul.mubr.f32.gmra.mrb[0].mxu0 %v385
  %v480 = vpop.f32.mrb[0].mxu0
  %v481 = vadd.f32 %v374, %v480
  %v482 = vpop.f32.mrb[0].mxu0
  %483 = vmatprep.mubr.f32.mxu0 0.0
  %484 = vmatmul.mubr.f32.gmra.mrb[0].mxu0 %v388
  %v485 = vpop.f32.mrb[0].mxu0
  %v486 = vadd.f32 %v374, %v485
  %v487 = vpop.f32.mrb[0].mxu0
  %488 = vmatprep.mubr.f32.mxu0 0.0
  %489 = vmatmul.mubr.f32.gmra.mrb[0].mxu0 %v391
  %v490 = vpop.f32.mrb[0].mxu0
  %v491 = vadd.f32 %v374, %v490
  %v492 = vpop.f32.mrb[0].mxu0
  %493 = vmatprep.mubr.f32.mxu0 0.0
  %494 = vmatmul.mubr.f32.gmra.mrb[0].mxu0 %v394
  %v495 = vpop.f32.mrb[0].mxu0
  %v496 = vadd.f32 %v374, %v495
  %v497 = vpop.f32.mrb[0].mxu0
  %498 = vmatprep.mubr.f32.mxu0 0.0
  %499 = vmatmul.mubr.f32.gmra.mrb[0].mxu0 %v397
  %v500 = vpop.f32.mrb[0].mxu0
  %v501 = vadd.f32 %v374, %v500
  %v502 = vpop.f32.mrb[0].mxu0
  %503 = vdwg.mxu0
  %v504 = vmul.f32 %v466, %v69
  %v505 = vmul.f32 %v471, %v70
  %v506 = vmul.f32 %v476, %v71
  %v507 = vmul.f32 %v481, %v72
  %v508 = vmul.f32 %v486, %v73
  %v509 = vmul.f32 %v491, %v74
  %v510 = vmul.f32 %v496, %v75
  %v511 = vmul.f32 %v501, %v76
  %v512 = vlaneseq
  %v513 = vshrl.u32 %v512, 7
  %v514 = vsub.s32 0, %v513
  %v515 = vrot.slane %v154, %v514
  %516 = vmatprep.subr.mxu0 0.0
  %517 = vmatpush1.msra.mxu0 %v143
  %518 = vmatprep.subr.mxu0 0.0
  %519 = vmatpush1.msra.mxu0 %v144
  %520 = vmatprep.subr.mxu0 0.0
  %521 = vmatpush1.msra.mxu0 %v145
  %522 = vmatprep.subr.mxu0 0.0
  %523 = vmatpush1.msra.mxu0 %v146
  %524 = vmatprep.subr.mxu0 0.0
  %525 = vmatpush1.msra.mxu0 0.0
  %526 = vmatprep.subr.mxu0 0.0
  %527 = vmatpush1.msra.mxu0 0.0
  %528 = vmatprep.subr.mxu0 0.0
  %529 = vmatpush1.msra.mxu0 0.0
  %530 = vmatprep.subr.mxu0 0.0
  %531 = vmatpush1.msra.mxu0 0.0
  %532 = vmatprep.subr.mxu0 0.0
  %533 = vmatpush1.msra.mxu0 0.0
  %534 = vmatprep.subr.mxu0 0.0
  %535 = vmatpush1.msra.mxu0 0.0
  %536 = vmatprep.subr.mxu0 0.0
  %537 = vmatpush1.msra.mxu0 0.0
  %538 = vmatprep.subr.mxu0 0.0
  %539 = vmatpush1.msra.mxu0 0.0
  %540 = vmatprep.subr.mxu0 0.0
  %541 = vmatpush1.msra.mxu0 0.0
  %542 = vmatprep.subr.mxu0 0.0
  %543 = vmatpush1.msra.mxu0 0.0
  %544 = vmatprep.subr.mxu0 0.0
  %545 = vmatpush1.msra.mxu0 0.0
  %546 = vmatprep.subr.mxu0 0.0
  %547 = vmatpush1.msra.mxu0 0.0
  %548 = vmatprep.subr.mxu0 0.0
  %549 = vmatpush1.msra.mxu0 0.0
  %550 = vmatprep.subr.mxu0 0.0
  %551 = vmatpush1.msra.mxu0 0.0
  %552 = vmatprep.subr.mxu0 0.0
  %553 = vmatpush1.msra.mxu0 0.0
  %554 = vmatprep.subr.mxu0 0.0
  %555 = vmatpush1.msra.mxu0 0.0
  %556 = vmatprep.subr.mxu0 0.0
  %557 = vmatpush1.msra.mxu0 0.0
  %558 = vmatprep.subr.mxu0 0.0
  %559 = vmatpush1.msra.mxu0 0.0
  %560 = vmatprep.subr.mxu0 0.0
  %561 = vmatpush1.msra.mxu0 0.0
  %562 = vmatprep.subr.mxu0 0.0
  %563 = vmatpush1.msra.mxu0 0.0
  %564 = vmatprep.subr.mxu0 0.0
  %565 = vmatpush1.msra.mxu0 0.0
  %566 = vmatprep.subr.mxu0 0.0
  %567 = vmatpush1.msra.mxu0 0.0
  %568 = vmatprep.subr.mxu0 0.0
  %569 = vmatpush1.msra.mxu0 0.0
  %570 = vmatprep.subr.mxu0 0.0
  %571 = vmatpush1.msra.mxu0 0.0
  %572 = vmatprep.subr.mxu0 0.0
  %573 = vmatpush1.msra.mxu0 0.0
  %574 = vmatprep.subr.mxu0 0.0
  %575 = vmatpush1.msra.mxu0 0.0
  %576 = vmatprep.subr.mxu0 0.0
  %577 = vmatpush1.msra.mxu0 0.0
  %578 = vmatprep.subr.mxu0 0.0
  %579 = vmatpush1.msra.mxu0 0.0
  %580 = vmatprep.mubr.f32.mxu0 0.0
  %581 = vmatmul.mubr.f32.gmra.mrb[0].mxu0 %v376
  %v582 = vpop.f32.mrb[0].mxu0
  %v583 = vadd.f32 %v515, %v582
  %v584 = vpop.f32.mrb[0].mxu0
  %585 = vmatprep.mubr.f32.mxu0 0.0
  %586 = vmatmul.mubr.f32.gmra.mrb[0].mxu0 %v379
  %v587 = vpop.f32.mrb[0].mxu0
  %v588 = vadd.f32 %v515, %v587
  %v589 = vpop.f32.mrb[0].mxu0
  %590 = vmatprep.mubr.f32.mxu0 0.0
  %591 = vmatmul.mubr.f32.gmra.mrb[0].mxu0 %v382
  %v592 = vpop.f32.mrb[0].mxu0
  %v593 = vadd.f32 %v515, %v592
  %v594 = vpop.f32.mrb[0].mxu0
  %595 = vmatprep.mubr.f32.mxu0 0.0
  %596 = vmatmul.mubr.f32.gmra.mrb[0].mxu0 %v385
  %v597 = vpop.f32.mrb[0].mxu0
  %v598 = vadd.f32 %v515, %v597
  %v599 = vpop.f32.mrb[0].mxu0
  %600 = vmatprep.mubr.f32.mxu0 0.0
  %601 = vmatmul.mubr.f32.gmra.mrb[0].mxu0 %v388
  %v602 = vpop.f32.mrb[0].mxu0
  %v603 = vadd.f32 %v515, %v602
  %v604 = vpop.f32.mrb[0].mxu0
  %605 = vmatprep.mubr.f32.mxu0 0.0
  %606 = vmatmul.mubr.f32.gmra.mrb[0].mxu0 %v391
  %v607 = vpop.f32.mrb[0].mxu0
  %v608 = vadd.f32 %v515, %v607
  %v609 = vpop.f32.mrb[0].mxu0
  %610 = vmatprep.mubr.f32.mxu0 0.0
  %611 = vmatmul.mubr.f32.gmra.mrb[0].mxu0 %v394
  %v612 = vpop.f32.mrb[0].mxu0
  %v613 = vadd.f32 %v515, %v612
  %v614 = vpop.f32.mrb[0].mxu0
  %615 = vmatprep.mubr.f32.mxu0 0.0
  %616 = vmatmul.mubr.f32.gmra.mrb[0].mxu0 %v397
  %v617 = vpop.f32.mrb[0].mxu0
  %v618 = vadd.f32 %v515, %v617
  %v619 = vpop.f32.mrb[0].mxu0
  %620 = vdwg.mxu0
  %v621 = vmul.f32 %v583, %v69
  %v622 = vmul.f32 %v588, %v70
  %v623 = vmul.f32 %v593, %v71
  %v624 = vmul.f32 %v598, %v72
  %v625 = vmul.f32 %v603, %v73
  %v626 = vmul.f32 %v608, %v74
  %v627 = vmul.f32 %v613, %v75
  %v628 = vmul.f32 %v618, %v76
  %v630 = vsel %vm89, %v363, 0
  %v633 = vsel %vm89, %v368, 0
  %v636 = vsel %vm89, %v504, 0
  %v639 = vsel %vm89, %v505, 0
  %v642 = vsel %vm89, %v506, 0
  %v645 = vsel %vm89, %v507, 0
  %v648 = vsel %vm89, %v508, 0
  %v651 = vsel %vm89, %v509, 0
  %v654 = vsel %vm89, %v510, 0
  %v657 = vsel %vm89, %v511, 0
  %659 = vmatprep.subr.mxu0 0.0
  %660 = vmatpush1.xpose.msra.mxu0 %v636
  %661 = vmatprep.subr.mxu0 0.0
  %662 = vmatpush1.xpose.msra.mxu0 %v639
  %663 = vmatprep.subr.mxu0 0.0
  %664 = vmatpush1.xpose.msra.mxu0 %v642
  %665 = vmatprep.subr.mxu0 0.0
  %666 = vmatpush1.xpose.msra.mxu0 %v645
  %667 = vmatprep.subr.mxu0 0.0
  %668 = vmatpush1.xpose.msra.mxu0 %v648
  %669 = vmatprep.subr.mxu0 0.0
  %670 = vmatpush1.xpose.msra.mxu0 %v651
  %671 = vmatprep.subr.mxu0 0.0
  %672 = vmatpush1.xpose.msra.mxu0 %v654
  %673 = vmatprep.subr.mxu0 0.0
  %674 = vmatpush1.xpose.msra.mxu0 %v657
  %675 = vmatprep.subr.mxu0 0.0
  %676 = vmatpush1.xpose.msra.mxu0 0.0
  %677 = vmatprep.subr.mxu0 0.0
  %678 = vmatpush1.xpose.msra.mxu0 0.0
  %679 = vmatprep.subr.mxu0 0.0
  %680 = vmatpush1.xpose.msra.mxu0 0.0
  %681 = vmatprep.subr.mxu0 0.0
  %682 = vmatpush1.xpose.msra.mxu0 0.0
  %683 = vmatprep.subr.mxu0 0.0
  %684 = vmatpush1.xpose.msra.mxu0 0.0
  %685 = vmatprep.subr.mxu0 0.0
  %686 = vmatpush1.xpose.msra.mxu0 0.0
  %687 = vmatprep.subr.mxu0 0.0
  %688 = vmatpush1.xpose.msra.mxu0 0.0
  %689 = vmatprep.subr.mxu0 0.0
  %690 = vmatpush1.xpose.msra.mxu0 0.0
  %691 = vmatprep.subr.mxu0 0.0
  %692 = vmatpush1.xpose.msra.mxu0 0.0
  %693 = vmatprep.subr.mxu0 0.0
  %694 = vmatpush1.xpose.msra.mxu0 0.0
  %695 = vmatprep.subr.mxu0 0.0
  %696 = vmatpush1.xpose.msra.mxu0 0.0
  %697 = vmatprep.subr.mxu0 0.0
  %698 = vmatpush1.xpose.msra.mxu0 0.0
  %699 = vmatprep.subr.mxu0 0.0
  %700 = vmatpush1.xpose.msra.mxu0 0.0
  %701 = vmatprep.subr.mxu0 0.0
  %702 = vmatpush1.xpose.msra.mxu0 0.0
  %703 = vmatprep.subr.mxu0 0.0
  %704 = vmatpush1.xpose.msra.mxu0 0.0
  %705 = vmatprep.subr.mxu0 0.0
  %706 = vmatpush1.xpose.msra.mxu0 0.0
  %707 = vmatprep.subr.mxu0 0.0
  %708 = vmatpush1.xpose.msra.mxu0 0.0
  %709 = vmatprep.subr.mxu0 0.0
  %710 = vmatpush1.xpose.msra.mxu0 0.0
  %711 = vmatprep.subr.mxu0 0.0
  %712 = vmatpush1.xpose.msra.mxu0 0.0
  %713 = vmatprep.subr.mxu0 0.0
  %714 = vmatpush1.xpose.msra.mxu0 0.0
  %715 = vmatprep.subr.mxu0 0.0
  %716 = vmatpush1.xpose.msra.mxu0 0.0
  %717 = vmatprep.subr.mxu0 0.0
  %718 = vmatpush1.xpose.msra.mxu0 0.0
  %719 = vmatprep.subr.mxu0 0.0
  %720 = vmatpush1.xpose.msra.mxu0 0.0
  %721 = vmatprep.subr.mxu0 0.0
  %722 = vmatpush1.xpose.msra.mxu0 0.0
  %723 = vmatprep.mubr.f32.mxu0 0.0
  %724 = vmatmul.mubr.f32.gmra.mrb[0].mxu0 %v630
  %v725 = vpop.f32.mrb[0].mxu0
  %v726 = vadd.f32 0.0, %v725
  %v727 = vpop.f32.mrb[0].mxu0
  %728 = vmatprep.mubr.f32.mxu0 0.0
  %729 = vmatmul.mubr.f32.gmra.mrb[0].mxu0 %v633
  %v730 = vpop.f32.mrb[0].mxu0
  %v731 = vadd.f32 0.0, %v730
  %v732 = vpop.f32.mrb[0].mxu0
  %733 = vdwg.mxu0
  %v734 = vmul.f32 %v726, 0.35355338
  %v735 = vmul.f32 %v731, 0.35355338
  %v736 = vadd.f32 %v734, %v57
  %v737 = vadd.f32 %v735, %v58
  %vm738 = vcmask 523264
  %v739 = vsel %vm738, %v736, -inf
  %740 = vmax.xlane.f32.xlu0 %v739
  %v741 = vpop.xlane.xlu0 %740
  %v742 = vsel %vm738, %v737, -inf
  %743 = vmax.xlane.f32.xlu0 %v742
  %v744 = vpop.xlane.xlu0 %743
  %v745 = vsub.f32 %v736, %v741
  %v746 = vsub.f32 %v737, %v744
  %v747 = vmul.f32 %v745, 1.442695
  %v748 = vpow.pop %v747
  %v749 = vmul.f32 %v746, 1.442695
  %v750 = vpow.pop %v749
  %v752 = vsel %vm738, %v748, 0
  %v755 = vsel %vm738, %v750, 0
  %757 = vmatprep.subr.mxu0 0.0
  %758 = vmatpush1.msra.mxu0 %v77
  %759 = vmatprep.subr.mxu0 0.0
  %760 = vmatpush1.msra.mxu0 %v78
  %761 = vmatprep.subr.mxu0 0.0
  %762 = vmatpush1.msra.mxu0 %v79
  %763 = vmatprep.subr.mxu0 0.0
  %764 = vmatpush1.msra.mxu0 %v80
  %765 = vmatprep.subr.mxu0 0.0
  %766 = vmatpush1.msra.mxu0 %v81
  %767 = vmatprep.subr.mxu0 0.0
  %768 = vmatpush1.msra.mxu0 %v82
  %769 = vmatprep.subr.mxu0 0.0
  %770 = vmatpush1.msra.mxu0 %v83
  %771 = vmatprep.subr.mxu0 0.0
  %772 = vmatpush1.msra.mxu0 %v84
  %773 = vmatprep.subr.mxu0 0.0
  %774 = vmatpush1.msra.mxu0 0.0
  %775 = vmatprep.subr.mxu0 0.0
  %776 = vmatpush1.msra.mxu0 0.0
  %777 = vmatprep.subr.mxu0 0.0
  %778 = vmatpush1.msra.mxu0 0.0
  %779 = vmatprep.subr.mxu0 0.0
  %780 = vmatpush1.msra.mxu0 0.0
  %781 = vmatprep.subr.mxu0 0.0
  %782 = vmatpush1.msra.mxu0 0.0
  %783 = vmatprep.subr.mxu0 0.0
  %784 = vmatpush1.msra.mxu0 0.0
  %785 = vmatprep.subr.mxu0 0.0
  %786 = vmatpush1.msra.mxu0 0.0
  %787 = vmatprep.subr.mxu0 0.0
  %788 = vmatpush1.msra.mxu0 0.0
  %789 = vmatprep.subr.mxu0 0.0
  %790 = vmatpush1.msra.mxu0 0.0
  %791 = vmatprep.subr.mxu0 0.0
  %792 = vmatpush1.msra.mxu0 0.0
  %793 = vmatprep.subr.mxu0 0.0
  %794 = vmatpush1.msra.mxu0 0.0
  %795 = vmatprep.subr.mxu0 0.0
  %796 = vmatpush1.msra.mxu0 0.0
  %797 = vmatprep.subr.mxu0 0.0
  %798 = vmatpush1.msra.mxu0 0.0
  %799 = vmatprep.subr.mxu0 0.0
  %800 = vmatpush1.msra.mxu0 0.0
  %801 = vmatprep.subr.mxu0 0.0
  %802 = vmatpush1.msra.mxu0 0.0
  %803 = vmatprep.subr.mxu0 0.0
  %804 = vmatpush1.msra.mxu0 0.0
  %805 = vmatprep.subr.mxu0 0.0
  %806 = vmatpush1.msra.mxu0 0.0
  %807 = vmatprep.subr.mxu0 0.0
  %808 = vmatpush1.msra.mxu0 0.0
  %809 = vmatprep.subr.mxu0 0.0
  %810 = vmatpush1.msra.mxu0 0.0
  %811 = vmatprep.subr.mxu0 0.0
  %812 = vmatpush1.msra.mxu0 0.0
  %813 = vmatprep.subr.mxu0 0.0
  %814 = vmatpush1.msra.mxu0 0.0
  %815 = vmatprep.subr.mxu0 0.0
  %816 = vmatpush1.msra.mxu0 0.0
  %817 = vmatprep.subr.mxu0 0.0
  %818 = vmatpush1.msra.mxu0 0.0
  %819 = vmatprep.subr.mxu0 0.0
  %820 = vmatpush1.msra.mxu0 0.0
  %821 = vmatprep.mubr.f32.mxu0 0.0
  %822 = vmatmul.mubr.f32.gmra.mrb[0].mxu0 %v752
  %v823 = vpop.f32.mrb[0].mxu0
  %v824 = vadd.f32 0.0, %v823
  %v825 = vpop.f32.mrb[0].mxu0
  %826 = vmatprep.mubr.f32.mxu0 0.0
  %827 = vmatmul.mubr.f32.gmra.mrb[0].mxu0 %v755
  %v828 = vpop.f32.mrb[0].mxu0
  %v829 = vadd.f32 0.0, %v828
  %v830 = vpop.f32.mrb[0].mxu0
  %831 = vdwg.mxu0
  %v832 = vrcp.pop %v824
  %v833 = vrcp.pop %v829
  %v834 = vmul.f32 %v748, %v832
  %v835 = vmul.f32 %v750, %v833
  %v836 = vmul.f32 %v834, %v85
  %v837 = vmul.f32 %v835, %v86
  %v839 = vsel %vm738, %v836, 0
  %v842 = vsel %vm738, %v837, 0
  %844 = vmatprep.subr.mxu0 0.0
  %845 = vmatpush1.msra.mxu0 %v621
  %846 = vmatprep.subr.mxu0 0.0
  %847 = vmatpush1.msra.mxu0 %v622
  %848 = vmatprep.subr.mxu0 0.0
  %849 = vmatpush1.msra.mxu0 %v623
  %850 = vmatprep.subr.mxu0 0.0
  %851 = vmatpush1.msra.mxu0 %v624
  %852 = vmatprep.subr.mxu0 0.0
  %853 = vmatpush1.msra.mxu0 %v625
  %854 = vmatprep.subr.mxu0 0.0
  %855 = vmatpush1.msra.mxu0 %v626
  %856 = vmatprep.subr.mxu0 0.0
  %857 = vmatpush1.msra.mxu0 %v627
  %858 = vmatprep.subr.mxu0 0.0
  %859 = vmatpush1.msra.mxu0 %v628
  %860 = vmatprep.subr.mxu0 0.0
  %861 = vmatpush1.msra.mxu0 0.0
  %862 = vmatprep.subr.mxu0 0.0
  %863 = vmatpush1.msra.mxu0 0.0
  %864 = vmatprep.subr.mxu0 0.0
  %865 = vmatpush1.msra.mxu0 0.0
  %866 = vmatprep.subr.mxu0 0.0
  %867 = vmatpush1.msra.mxu0 0.0
  %868 = vmatprep.subr.mxu0 0.0
  %869 = vmatpush1.msra.mxu0 0.0
  %870 = vmatprep.subr.mxu0 0.0
  %871 = vmatpush1.msra.mxu0 0.0
  %872 = vmatprep.subr.mxu0 0.0
  %873 = vmatpush1.msra.mxu0 0.0
  %874 = vmatprep.subr.mxu0 0.0
  %875 = vmatpush1.msra.mxu0 0.0
  %876 = vmatprep.subr.mxu0 0.0
  %877 = vmatpush1.msra.mxu0 0.0
  %878 = vmatprep.subr.mxu0 0.0
  %879 = vmatpush1.msra.mxu0 0.0
  %880 = vmatprep.subr.mxu0 0.0
  %881 = vmatpush1.msra.mxu0 0.0
  %882 = vmatprep.subr.mxu0 0.0
  %883 = vmatpush1.msra.mxu0 0.0
  %884 = vmatprep.subr.mxu0 0.0
  %885 = vmatpush1.msra.mxu0 0.0
  %886 = vmatprep.subr.mxu0 0.0
  %887 = vmatpush1.msra.mxu0 0.0
  %888 = vmatprep.subr.mxu0 0.0
  %889 = vmatpush1.msra.mxu0 0.0
  %890 = vmatprep.subr.mxu0 0.0
  %891 = vmatpush1.msra.mxu0 0.0
  %892 = vmatprep.subr.mxu0 0.0
  %893 = vmatpush1.msra.mxu0 0.0
  %894 = vmatprep.subr.mxu0 0.0
  %895 = vmatpush1.msra.mxu0 0.0
  %896 = vmatprep.subr.mxu0 0.0
  %897 = vmatpush1.msra.mxu0 0.0
  %898 = vmatprep.subr.mxu0 0.0
  %899 = vmatpush1.msra.mxu0 0.0
  %900 = vmatprep.subr.mxu0 0.0
  %901 = vmatpush1.msra.mxu0 0.0
  %902 = vmatprep.subr.mxu0 0.0
  %903 = vmatpush1.msra.mxu0 0.0
  %904 = vmatprep.subr.mxu0 0.0
  %905 = vmatpush1.msra.mxu0 0.0
  %906 = vmatprep.subr.mxu0 0.0
  %907 = vmatpush1.msra.mxu0 0.0
  %908 = vmatprep.mubr.f32.mxu0 0.0
  %909 = vmatmul.mubr.f32.gmra.mrb[0].mxu0 %v839
  %v910 = vpop.f32.mrb[0].mxu0
  %v911 = vadd.f32 0.0, %v910
  %v912 = vpop.f32.mrb[0].mxu0
  %913 = vmatprep.mubr.f32.mxu0 0.0
  %914 = vmatmul.mubr.f32.gmra.mrb[0].mxu0 %v842
  %v915 = vpop.f32.mrb[0].mxu0
  %v916 = vadd.f32 0.0, %v915
  %v917 = vpop.f32.mrb[0].mxu0
  %918 = vdwg.mxu0
  %v919 = vlaneseq
  %v920 = vshrl.u32 %v919, 7
  %v921 = vsub.s32 0, %v920
  %v922 = vrot.slane %v155, %v921
  %v924 = vsel %vm89, %v911, 0
  %v927 = vsel %vm89, %v916, 0
  %929 = vmatprep.subr.mxu0 0.0
  %930 = vmatpush1.msra.mxu0 %v148
  %931 = vmatprep.subr.mxu0 0.0
  %932 = vmatpush1.msra.mxu0 %v149
  %933 = vmatprep.subr.mxu0 0.0
  %934 = vmatpush1.msra.mxu0 %v150
  %935 = vmatprep.subr.mxu0 0.0
  %936 = vmatpush1.msra.mxu0 %v151
  %937 = vmatprep.subr.mxu0 0.0
  %938 = vmatpush1.msra.mxu0 0.0
  %939 = vmatprep.subr.mxu0 0.0
  %940 = vmatpush1.msra.mxu0 0.0
  %941 = vmatprep.subr.mxu0 0.0
  %942 = vmatpush1.msra.mxu0 0.0
  %943 = vmatprep.subr.mxu0 0.0
  %944 = vmatpush1.msra.mxu0 0.0
  %945 = vmatprep.subr.mxu0 0.0
  %946 = vmatpush1.msra.mxu0 0.0
  %947 = vmatprep.subr.mxu0 0.0
  %948 = vmatpush1.msra.mxu0 0.0
  %949 = vmatprep.subr.mxu0 0.0
  %950 = vmatpush1.msra.mxu0 0.0
  %951 = vmatprep.subr.mxu0 0.0
  %952 = vmatpush1.msra.mxu0 0.0
  %953 = vmatprep.subr.mxu0 0.0
  %954 = vmatpush1.msra.mxu0 0.0
  %955 = vmatprep.subr.mxu0 0.0
  %956 = vmatpush1.msra.mxu0 0.0
  %957 = vmatprep.subr.mxu0 0.0
  %958 = vmatpush1.msra.mxu0 0.0
  %959 = vmatprep.subr.mxu0 0.0
  %960 = vmatpush1.msra.mxu0 0.0
  %961 = vmatprep.subr.mxu0 0.0
  %962 = vmatpush1.msra.mxu0 0.0
  %963 = vmatprep.subr.mxu0 0.0
  %964 = vmatpush1.msra.mxu0 0.0
  %965 = vmatprep.subr.mxu0 0.0
  %966 = vmatpush1.msra.mxu0 0.0
  %967 = vmatprep.subr.mxu0 0.0
  %968 = vmatpush1.msra.mxu0 0.0
  %969 = vmatprep.subr.mxu0 0.0
  %970 = vmatpush1.msra.mxu0 0.0
  %971 = vmatprep.subr.mxu0 0.0
  %972 = vmatpush1.msra.mxu0 0.0
  %973 = vmatprep.subr.mxu0 0.0
  %974 = vmatpush1.msra.mxu0 0.0
  %975 = vmatprep.subr.mxu0 0.0
  %976 = vmatpush1.msra.mxu0 0.0
  %977 = vmatprep.subr.mxu0 0.0
  %978 = vmatpush1.msra.mxu0 0.0
  %979 = vmatprep.subr.mxu0 0.0
  %980 = vmatpush1.msra.mxu0 0.0
  %981 = vmatprep.subr.mxu0 0.0
  %982 = vmatpush1.msra.mxu0 0.0
  %983 = vmatprep.subr.mxu0 0.0
  %984 = vmatpush1.msra.mxu0 0.0
  %985 = vmatprep.subr.mxu0 0.0
  %986 = vmatpush1.msra.mxu0 0.0
  %987 = vmatprep.subr.mxu0 0.0
  %988 = vmatpush1.msra.mxu0 0.0
  %989 = vmatprep.subr.mxu0 0.0
  %990 = vmatpush1.msra.mxu0 0.0
  %991 = vmatprep.subr.mxu0 0.0
  %992 = vmatpush1.msra.mxu0 0.0
  %993 = vmatprep.mubr.f32.mxu0 0.0
  %994 = vmatmul.mubr.f32.gmra.mrb[0].mxu0 %v924
  %v995 = vpop.f32.mrb[0].mxu0
  %v996 = vadd.f32 %v922, %v995
  %v997 = vpop.f32.mrb[0].mxu0
  %998 = vmatprep.mubr.f32.mxu0 0.0
  %999 = vmatmul.mubr.f32.gmra.mrb[0].mxu0 %v927
  %v1000 = vpop.f32.mrb[0].mxu0
  %v1001 = vadd.f32 %v922, %v1000
  %v1002 = vpop.f32.mrb[0].mxu0
  %1003 = vdwg.mxu0
  %v1004 = vadd.f32 %v53, %v996
  %v1005 = vadd.f32 %v54, %v1001
  %v1006 = vld [vmem:[%s14 + $0x1] sm:$0x1]
  %v1007 = vld [vmem:[%s15 + $0x1] sm:$0x1]
  %v1008 = vsel %vm89, %v1004, 0.0
  %1009 = vadd.xlane.f32.xlu0 %v1008
  %v1010 = vpop.xlane.xlu0 %1009
  %v1011 = vsel %vm89, %v1005, 0.0
  %1012 = vadd.xlane.f32.xlu0 %v1011
  %v1013 = vpop.xlane.xlu0 %1012
  %v1014 = vmul.f32 %v1010, %v96
  %v1015 = vmul.f32 %v1013, %v96
  %v1016 = vmul.f32 %v1004, %v1004
  %v1017 = vmul.f32 %v1005, %v1005
  %v1018 = vsel %vm89, %v1016, 0.0
  %1019 = vadd.xlane.f32.xlu0 %v1018
  %v1020 = vpop.xlane.xlu0 %1019
  %v1021 = vsel %vm89, %v1017, 0.0
  %1022 = vadd.xlane.f32.xlu0 %v1021
  %v1023 = vpop.xlane.xlu0 %1022
  %v1024 = vmul.f32 %v1020, %v96
  %v1025 = vmul.f32 %v1023, %v96
  %v1026 = vmul.f32 %v1014, %v1014
  %v1027 = vmul.f32 %v1015, %v1015
  %v1028 = vsub.f32 %v1024, %v1026
  %v1029 = vsub.f32 %v1025, %v1027
  %v1030 = vsub.f32 %v1004, %v1014
  %v1031 = vsub.f32 %v1005, %v1015
  %v1032 = vadd.f32 %v1028, 1e-06
  %v1033 = vadd.f32 %v1029, 1e-06
  %v1034 = vrsqrt.pop %v1032
  %v1035 = vrsqrt.pop %v1033
  %v1036 = vmul.f32 %v1030, %v1034
  %v1037 = vmul.f32 %v1031, %v1035
  %v1038 = vlaneseq
  %v1039 = vshrl.u32 %v1038, 7
  %v1040 = vsub.s32 0, %v1039
  %v1041 = vrot.slane %v1006, %v1040
  %v1042 = vmul.f32 %v1036, %v1041
  %v1043 = vmul.f32 %v1037, %v1041
  %v1044 = vlaneseq
  %v1045 = vshrl.u32 %v1044, 7
  %v1046 = vsub.s32 0, %v1045
  %v1047 = vrot.slane %v1007, %v1046
  %v1048 = vadd.f32 %v1042, %v1047
  %v1049 = vadd.f32 %v1043, %v1047
  %s1050 = scalar_lea.vmem %s8, 128
  %v1051 = vld [vmem:[%s1050] sm:$0xff]
  %v1052 = vld [vmem:[%s1050 + $0x8] sm:$0xff]
  %v1053 = vld [vmem:[%s1050 + $0x10] sm:$0xff]
  %v1054 = vld [vmem:[%s1050 + $0x18] sm:$0xff]
  %s1055 = scalar_lea.vmem %s8, 160
  %v1056 = vld [vmem:[%s1055] sm:$0xff]
  %v1057 = vld [vmem:[%s1055 + $0x8] sm:$0xff]
  %v1058 = vld [vmem:[%s1055 + $0x10] sm:$0xff]
  %v1059 = vld [vmem:[%s1055 + $0x18] sm:$0xff]
  %s1060 = scalar_lea.vmem %s8, 192
  %v1061 = vld [vmem:[%s1060] sm:$0xff]
  %v1062 = vld [vmem:[%s1060 + $0x8] sm:$0xff]
  %v1063 = vld [vmem:[%s1060 + $0x10] sm:$0xff]
  %v1064 = vld [vmem:[%s1060 + $0x18] sm:$0xff]
  %s1065 = scalar_lea.vmem %s8, 224
  %v1066 = vld [vmem:[%s1065] sm:$0xff]
  %v1067 = vld [vmem:[%s1065 + $0x8] sm:$0xff]
  %v1068 = vld [vmem:[%s1065 + $0x10] sm:$0xff]
  %v1069 = vld [vmem:[%s1065 + $0x18] sm:$0xff]
  %v1070 = vld [vmem:[%s9 + $0x4] sm:$0x1]
  %v1071 = vld [vmem:[%s9 + $0x5] sm:$0x1]
  %v1072 = vld [vmem:[%s9 + $0x6] sm:$0x1]
  %v1073 = vld [vmem:[%s9 + $0x7] sm:$0x1]
  %1074 = vmatprep.subr.mxu0 0.0
  %1075 = vmatpush1.msra.mxu0 %v55
  %1076 = vmatprep.subr.mxu0 0.0
  %1077 = vmatpush1.msra.mxu0 %v56
  %1078 = vmatprep.subr.mxu0 0.0
  %1079 = vmatpush1.msra.mxu0 0.0
  %1080 = vmatprep.subr.mxu0 0.0
  %1081 = vmatpush1.msra.mxu0 0.0
  %1082 = vmatprep.subr.mxu0 0.0
  %1083 = vmatpush1.msra.mxu0 0.0
  %1084 = vmatprep.subr.mxu0 0.0
  %1085 = vmatpush1.msra.mxu0 0.0
  %1086 = vmatprep.subr.mxu0 0.0
  %1087 = vmatpush1.msra.mxu0 0.0
  %1088 = vmatprep.subr.mxu0 0.0
  %1089 = vmatpush1.msra.mxu0 0.0
  %1090 = vmatprep.subr.mxu0 0.0
  %1091 = vmatpush1.msra.mxu0 0.0
  %1092 = vmatprep.subr.mxu0 0.0
  %1093 = vmatpush1.msra.mxu0 0.0
  %1094 = vmatprep.subr.mxu0 0.0
  %1095 = vmatpush1.msra.mxu0 0.0
  %1096 = vmatprep.subr.mxu0 0.0
  %1097 = vmatpush1.msra.mxu0 0.0
  %1098 = vmatprep.subr.mxu0 0.0
  %1099 = vmatpush1.msra.mxu0 0.0
  %1100 = vmatprep.subr.mxu0 0.0
  %1101 = vmatpush1.msra.mxu0 0.0
  %1102 = vmatprep.subr.mxu0 0.0
  %1103 = vmatpush1.msra.mxu0 0.0
  %1104 = vmatprep.subr.mxu0 0.0
  %1105 = vmatpush1.msra.mxu0 0.0
  %1106 = vmatprep.subr.mxu0 0.0
  %1107 = vmatpush1.msra.mxu0 0.0
  %1108 = vmatprep.subr.mxu0 0.0
  %1109 = vmatpush1.msra.mxu0 0.0
  %1110 = vmatprep.subr.mxu0 0.0
  %1111 = vmatpush1.msra.mxu0 0.0
  %1112 = vmatprep.subr.mxu0 0.0
  %1113 = vmatpush1.msra.mxu0 0.0
  %1114 = vmatprep.subr.mxu0 0.0
  %1115 = vmatpush1.msra.mxu0 0.0
  %1116 = vmatprep.subr.mxu0 0.0
  %1117 = vmatpush1.msra.mxu0 0.0
  %1118 = vmatprep.subr.mxu0 0.0
  %1119 = vmatpush1.msra.mxu0 0.0
  %1120 = vmatprep.subr.mxu0 0.0
  %1121 = vmatpush1.msra.mxu0 0.0
  %1122 = vmatprep.subr.mxu0 0.0
  %1123 = vmatpush1.msra.mxu0 0.0
  %1124 = vmatprep.subr.mxu0 0.0
  %1125 = vmatpush1.msra.mxu0 0.0
  %1126 = vmatprep.subr.mxu0 0.0
  %1127 = vmatpush1.msra.mxu0 0.0
  %1128 = vmatprep.subr.mxu0 0.0
  %1129 = vmatpush1.msra.mxu0 0.0
  %1130 = vmatprep.subr.mxu0 0.0
  %1131 = vmatpush1.msra.mxu0 0.0
  %1132 = vmatprep.subr.mxu0 0.0
  %1133 = vmatpush1.msra.mxu0 0.0
  %1134 = vmatprep.subr.mxu0 0.0
  %1135 = vmatpush1.msra.mxu0 0.0
  %1136 = vmatprep.subr.mxu0 0.0
  %1137 = vmatpush1.msra.mxu0 0.0
  %1138 = vmatprep.mubr.f32.mxu0 0.0
  %1139 = vmatmul.mubr.f32.gmra.mrb[0].mxu0 %v158
  %v1140 = vpop.f32.mrb[0].mxu0
  %v1141 = vadd.f32 0.0, %v1140
  %v1142 = vpop.f32.mrb[0].mxu0
  %1143 = vmatprep.mubr.f32.mxu0 0.0
  %1144 = vmatmul.mubr.f32.gmra.mrb[0].mxu0 %v161
  %v1145 = vpop.f32.mrb[0].mxu0
  %v1146 = vadd.f32 0.0, %v1145
  %v1147 = vpop.f32.mrb[0].mxu0
  %1148 = vmatprep.mubr.f32.mxu0 0.0
  %1149 = vmatmul.mubr.f32.gmra.mrb[0].mxu0 %v164
  %v1150 = vpop.f32.mrb[0].mxu0
  %v1151 = vadd.f32 0.0, %v1150
  %v1152 = vpop.f32.mrb[0].mxu0
  %1153 = vmatprep.mubr.f32.mxu0 0.0
  %1154 = vmatmul.mubr.f32.gmra.mrb[0].mxu0 %v167
  %v1155 = vpop.f32.mrb[0].mxu0
  %v1156 = vadd.f32 0.0, %v1155
  %v1157 = vpop.f32.mrb[0].mxu0
  %1158 = vmatprep.mubr.f32.mxu0 0.0
  %1159 = vmatmul.mubr.f32.gmra.mrb[0].mxu0 %v170
  %v1160 = vpop.f32.mrb[0].mxu0
  %v1161 = vadd.f32 0.0, %v1160
  %v1162 = vpop.f32.mrb[0].mxu0
  %1163 = vmatprep.mubr.f32.mxu0 0.0
  %1164 = vmatmul.mubr.f32.gmra.mrb[0].mxu0 %v173
  %v1165 = vpop.f32.mrb[0].mxu0
  %v1166 = vadd.f32 0.0, %v1165
  %v1167 = vpop.f32.mrb[0].mxu0
  %1168 = vmatprep.mubr.f32.mxu0 0.0
  %1169 = vmatmul.mubr.f32.gmra.mrb[0].mxu0 %v176
  %v1170 = vpop.f32.mrb[0].mxu0
  %v1171 = vadd.f32 0.0, %v1170
  %v1172 = vpop.f32.mrb[0].mxu0
  %1173 = vmatprep.mubr.f32.mxu0 0.0
  %1174 = vmatmul.mubr.f32.gmra.mrb[0].mxu0 %v179
  %v1175 = vpop.f32.mrb[0].mxu0
  %v1176 = vadd.f32 0.0, %v1175
  %v1177 = vpop.f32.mrb[0].mxu0
  %1178 = vdwg.mxu0
  %v1179 = vlaneseq
  %v1180 = vshrl.u32 %v1179, 7
  %v1181 = vsub.s32 0, %v1180
  %v1182 = vrot.slane %v1070, %v1181
  %v1184 = vsel %vm89, %v1048, 0
  %v1187 = vsel %vm89, %v1049, 0
  %1189 = vmatprep.subr.mxu0 0.0
  %1190 = vmatpush1.msra.mxu0 %v1051
  %1191 = vmatprep.subr.mxu0 0.0
  %1192 = vmatpush1.msra.mxu0 %v1052
  %1193 = vmatprep.subr.mxu0 0.0
  %1194 = vmatpush1.msra.mxu0 %v1053
  %1195 = vmatprep.subr.mxu0 0.0
  %1196 = vmatpush1.msra.mxu0 %v1054
  %1197 = vmatprep.subr.mxu0 0.0
  %1198 = vmatpush1.msra.mxu0 0.0
  %1199 = vmatprep.subr.mxu0 0.0
  %1200 = vmatpush1.msra.mxu0 0.0
  %1201 = vmatprep.subr.mxu0 0.0
  %1202 = vmatpush1.msra.mxu0 0.0
  %1203 = vmatprep.subr.mxu0 0.0
  %1204 = vmatpush1.msra.mxu0 0.0
  %1205 = vmatprep.subr.mxu0 0.0
  %1206 = vmatpush1.msra.mxu0 0.0
  %1207 = vmatprep.subr.mxu0 0.0
  %1208 = vmatpush1.msra.mxu0 0.0
  %1209 = vmatprep.subr.mxu0 0.0
  %1210 = vmatpush1.msra.mxu0 0.0
  %1211 = vmatprep.subr.mxu0 0.0
  %1212 = vmatpush1.msra.mxu0 0.0
  %1213 = vmatprep.subr.mxu0 0.0
  %1214 = vmatpush1.msra.mxu0 0.0
  %1215 = vmatprep.subr.mxu0 0.0
  %1216 = vmatpush1.msra.mxu0 0.0
  %1217 = vmatprep.subr.mxu0 0.0
  %1218 = vmatpush1.msra.mxu0 0.0
  %1219 = vmatprep.subr.mxu0 0.0
  %1220 = vmatpush1.msra.mxu0 0.0
  %1221 = vmatprep.subr.mxu0 0.0
  %1222 = vmatpush1.msra.mxu0 0.0
  %1223 = vmatprep.subr.mxu0 0.0
  %1224 = vmatpush1.msra.mxu0 0.0
  %1225 = vmatprep.subr.mxu0 0.0
  %1226 = vmatpush1.msra.mxu0 0.0
  %1227 = vmatprep.subr.mxu0 0.0
  %1228 = vmatpush1.msra.mxu0 0.0
  %1229 = vmatprep.subr.mxu0 0.0
  %1230 = vmatpush1.msra.mxu0 0.0
  %1231 = vmatprep.subr.mxu0 0.0
  %1232 = vmatpush1.msra.mxu0 0.0
  %1233 = vmatprep.subr.mxu0 0.0
  %1234 = vmatpush1.msra.mxu0 0.0
  %1235 = vmatprep.subr.mxu0 0.0
  %1236 = vmatpush1.msra.mxu0 0.0
  %1237 = vmatprep.subr.mxu0 0.0
  %1238 = vmatpush1.msra.mxu0 0.0
  %1239 = vmatprep.subr.mxu0 0.0
  %1240 = vmatpush1.msra.mxu0 0.0
  %1241 = vmatprep.subr.mxu0 0.0
  %1242 = vmatpush1.msra.mxu0 0.0
  %1243 = vmatprep.subr.mxu0 0.0
  %1244 = vmatpush1.msra.mxu0 0.0
  %1245 = vmatprep.subr.mxu0 0.0
  %1246 = vmatpush1.msra.mxu0 0.0
  %1247 = vmatprep.subr.mxu0 0.0
  %1248 = vmatpush1.msra.mxu0 0.0
  %1249 = vmatprep.subr.mxu0 0.0
  %1250 = vmatpush1.msra.mxu0 0.0
  %1251 = vmatprep.subr.mxu0 0.0
  %1252 = vmatpush1.msra.mxu0 0.0
  %1253 = vmatprep.mubr.f32.mxu0 0.0
  %1254 = vmatmul.mubr.f32.gmra.mrb[0].mxu0 %v1184
  %v1255 = vpop.f32.mrb[0].mxu0
  %v1256 = vadd.f32 %v1182, %v1255
  %v1257 = vpop.f32.mrb[0].mxu0
  %1258 = vmatprep.mubr.f32.mxu0 0.0
  %1259 = vmatmul.mubr.f32.gmra.mrb[0].mxu0 %v1187
  %v1260 = vpop.f32.mrb[0].mxu0
  %v1261 = vadd.f32 %v1182, %v1260
  %v1262 = vpop.f32.mrb[0].mxu0
  %1263 = vdwg.mxu0
  %v1264 = vlaneseq
  %v1265 = vshrl.u32 %v1264, 7
  %v1266 = vsub.s32 0, %v1265
  %v1267 = vrot.slane %v1071, %v1266
  %v1269 = vsel %vm89, %v1141, 0
  %v1272 = vsel %vm89, %v1146, 0
  %v1275 = vsel %vm89, %v1151, 0
  %v1278 = vsel %vm89, %v1156, 0
  %v1281 = vsel %vm89, %v1161, 0
  %v1284 = vsel %vm89, %v1166, 0
  %v1287 = vsel %vm89, %v1171, 0
  %v1290 = vsel %vm89, %v1176, 0
  %1292 = vmatprep.subr.mxu0 0.0
  %1293 = vmatpush1.msra.mxu0 %v1056
  %1294 = vmatprep.subr.mxu0 0.0
  %1295 = vmatpush1.msra.mxu0 %v1057
  %1296 = vmatprep.subr.mxu0 0.0
  %1297 = vmatpush1.msra.mxu0 %v1058
  %1298 = vmatprep.subr.mxu0 0.0
  %1299 = vmatpush1.msra.mxu0 %v1059
  %1300 = vmatprep.subr.mxu0 0.0
  %1301 = vmatpush1.msra.mxu0 0.0
  %1302 = vmatprep.subr.mxu0 0.0
  %1303 = vmatpush1.msra.mxu0 0.0
  %1304 = vmatprep.subr.mxu0 0.0
  %1305 = vmatpush1.msra.mxu0 0.0
  %1306 = vmatprep.subr.mxu0 0.0
  %1307 = vmatpush1.msra.mxu0 0.0
  %1308 = vmatprep.subr.mxu0 0.0
  %1309 = vmatpush1.msra.mxu0 0.0
  %1310 = vmatprep.subr.mxu0 0.0
  %1311 = vmatpush1.msra.mxu0 0.0
  %1312 = vmatprep.subr.mxu0 0.0
  %1313 = vmatpush1.msra.mxu0 0.0
  %1314 = vmatprep.subr.mxu0 0.0
  %1315 = vmatpush1.msra.mxu0 0.0
  %1316 = vmatprep.subr.mxu0 0.0
  %1317 = vmatpush1.msra.mxu0 0.0
  %1318 = vmatprep.subr.mxu0 0.0
  %1319 = vmatpush1.msra.mxu0 0.0
  %1320 = vmatprep.subr.mxu0 0.0
  %1321 = vmatpush1.msra.mxu0 0.0
  %1322 = vmatprep.subr.mxu0 0.0
  %1323 = vmatpush1.msra.mxu0 0.0
  %1324 = vmatprep.subr.mxu0 0.0
  %1325 = vmatpush1.msra.mxu0 0.0
  %1326 = vmatprep.subr.mxu0 0.0
  %1327 = vmatpush1.msra.mxu0 0.0
  %1328 = vmatprep.subr.mxu0 0.0
  %1329 = vmatpush1.msra.mxu0 0.0
  %1330 = vmatprep.subr.mxu0 0.0
  %1331 = vmatpush1.msra.mxu0 0.0
  %1332 = vmatprep.subr.mxu0 0.0
  %1333 = vmatpush1.msra.mxu0 0.0
  %1334 = vmatprep.subr.mxu0 0.0
  %1335 = vmatpush1.msra.mxu0 0.0
  %1336 = vmatprep.subr.mxu0 0.0
  %1337 = vmatpush1.msra.mxu0 0.0
  %1338 = vmatprep.subr.mxu0 0.0
  %1339 = vmatpush1.msra.mxu0 0.0
  %1340 = vmatprep.subr.mxu0 0.0
  %1341 = vmatpush1.msra.mxu0 0.0
  %1342 = vmatprep.subr.mxu0 0.0
  %1343 = vmatpush1.msra.mxu0 0.0
  %1344 = vmatprep.subr.mxu0 0.0
  %1345 = vmatpush1.msra.mxu0 0.0
  %1346 = vmatprep.subr.mxu0 0.0
  %1347 = vmatpush1.msra.mxu0 0.0
  %1348 = vmatprep.subr.mxu0 0.0
  %1349 = vmatpush1.msra.mxu0 0.0
  %1350 = vmatprep.subr.mxu0 0.0
  %1351 = vmatpush1.msra.mxu0 0.0
  %1352 = vmatprep.subr.mxu0 0.0
  %1353 = vmatpush1.msra.mxu0 0.0
  %1354 = vmatprep.subr.mxu0 0.0
  %1355 = vmatpush1.msra.mxu0 0.0
  %1356 = vmatprep.mubr.f32.mxu0 0.0
  %1357 = vmatmul.mubr.f32.gmra.mrb[0].mxu0 %v1269
  %v1358 = vpop.f32.mrb[0].mxu0
  %v1359 = vadd.f32 %v1267, %v1358
  %v1360 = vpop.f32.mrb[0].mxu0
  %1361 = vmatprep.mubr.f32.mxu0 0.0
  %1362 = vmatmul.mubr.f32.gmra.mrb[0].mxu0 %v1272
  %v1363 = vpop.f32.mrb[0].mxu0
  %v1364 = vadd.f32 %v1267, %v1363
  %v1365 = vpop.f32.mrb[0].mxu0
  %1366 = vmatprep.mubr.f32.mxu0 0.0
  %1367 = vmatmul.mubr.f32.gmra.mrb[0].mxu0 %v1275
  %v1368 = vpop.f32.mrb[0].mxu0
  %v1369 = vadd.f32 %v1267, %v1368
  %v1370 = vpop.f32.mrb[0].mxu0
  %1371 = vmatprep.mubr.f32.mxu0 0.0
  %1372 = vmatmul.mubr.f32.gmra.mrb[0].mxu0 %v1278
  %v1373 = vpop.f32.mrb[0].mxu0
  %v1374 = vadd.f32 %v1267, %v1373
  %v1375 = vpop.f32.mrb[0].mxu0
  %1376 = vmatprep.mubr.f32.mxu0 0.0
  %1377 = vmatmul.mubr.f32.gmra.mrb[0].mxu0 %v1281
  %v1378 = vpop.f32.mrb[0].mxu0
  %v1379 = vadd.f32 %v1267, %v1378
  %v1380 = vpop.f32.mrb[0].mxu0
  %1381 = vmatprep.mubr.f32.mxu0 0.0
  %1382 = vmatmul.mubr.f32.gmra.mrb[0].mxu0 %v1284
  %v1383 = vpop.f32.mrb[0].mxu0
  %v1384 = vadd.f32 %v1267, %v1383
  %v1385 = vpop.f32.mrb[0].mxu0
  %1386 = vmatprep.mubr.f32.mxu0 0.0
  %1387 = vmatmul.mubr.f32.gmra.mrb[0].mxu0 %v1287
  %v1388 = vpop.f32.mrb[0].mxu0
  %v1389 = vadd.f32 %v1267, %v1388
  %v1390 = vpop.f32.mrb[0].mxu0
  %1391 = vmatprep.mubr.f32.mxu0 0.0
  %1392 = vmatmul.mubr.f32.gmra.mrb[0].mxu0 %v1290
  %v1393 = vpop.f32.mrb[0].mxu0
  %v1394 = vadd.f32 %v1267, %v1393
  %v1395 = vpop.f32.mrb[0].mxu0
  %1396 = vdwg.mxu0
  %v1397 = vmul.f32 %v1359, %v69
  %v1398 = vmul.f32 %v1364, %v70
  %v1399 = vmul.f32 %v1369, %v71
  %v1400 = vmul.f32 %v1374, %v72
  %v1401 = vmul.f32 %v1379, %v73
  %v1402 = vmul.f32 %v1384, %v74
  %v1403 = vmul.f32 %v1389, %v75
  %v1404 = vmul.f32 %v1394, %v76
  %v1405 = vlaneseq
  %v1406 = vshrl.u32 %v1405, 7
  %v1407 = vsub.s32 0, %v1406
  %v1408 = vrot.slane %v1072, %v1407
  %1409 = vmatprep.subr.mxu0 0.0
  %1410 = vmatpush1.msra.mxu0 %v1061
  %1411 = vmatprep.subr.mxu0 0.0
  %1412 = vmatpush1.msra.mxu0 %v1062
  %1413 = vmatprep.subr.mxu0 0.0
  %1414 = vmatpush1.msra.mxu0 %v1063
  %1415 = vmatprep.subr.mxu0 0.0
  %1416 = vmatpush1.msra.mxu0 %v1064
  %1417 = vmatprep.subr.mxu0 0.0
  %1418 = vmatpush1.msra.mxu0 0.0
  %1419 = vmatprep.subr.mxu0 0.0
  %1420 = vmatpush1.msra.mxu0 0.0
  %1421 = vmatprep.subr.mxu0 0.0
  %1422 = vmatpush1.msra.mxu0 0.0
  %1423 = vmatprep.subr.mxu0 0.0
  %1424 = vmatpush1.msra.mxu0 0.0
  %1425 = vmatprep.subr.mxu0 0.0
  %1426 = vmatpush1.msra.mxu0 0.0
  %1427 = vmatprep.subr.mxu0 0.0
  %1428 = vmatpush1.msra.mxu0 0.0
  %1429 = vmatprep.subr.mxu0 0.0
  %1430 = vmatpush1.msra.mxu0 0.0
  %1431 = vmatprep.subr.mxu0 0.0
  %1432 = vmatpush1.msra.mxu0 0.0
  %1433 = vmatprep.subr.mxu0 0.0
  %1434 = vmatpush1.msra.mxu0 0.0
  %1435 = vmatprep.subr.mxu0 0.0
  %1436 = vmatpush1.msra.mxu0 0.0
  %1437 = vmatprep.subr.mxu0 0.0
  %1438 = vmatpush1.msra.mxu0 0.0
  %1439 = vmatprep.subr.mxu0 0.0
  %1440 = vmatpush1.msra.mxu0 0.0
  %1441 = vmatprep.subr.mxu0 0.0
  %1442 = vmatpush1.msra.mxu0 0.0
  %1443 = vmatprep.subr.mxu0 0.0
  %1444 = vmatpush1.msra.mxu0 0.0
  %1445 = vmatprep.subr.mxu0 0.0
  %1446 = vmatpush1.msra.mxu0 0.0
  %1447 = vmatprep.subr.mxu0 0.0
  %1448 = vmatpush1.msra.mxu0 0.0
  %1449 = vmatprep.subr.mxu0 0.0
  %1450 = vmatpush1.msra.mxu0 0.0
  %1451 = vmatprep.subr.mxu0 0.0
  %1452 = vmatpush1.msra.mxu0 0.0
  %1453 = vmatprep.subr.mxu0 0.0
  %1454 = vmatpush1.msra.mxu0 0.0
  %1455 = vmatprep.subr.mxu0 0.0
  %1456 = vmatpush1.msra.mxu0 0.0
  %1457 = vmatprep.subr.mxu0 0.0
  %1458 = vmatpush1.msra.mxu0 0.0
  %1459 = vmatprep.subr.mxu0 0.0
  %1460 = vmatpush1.msra.mxu0 0.0
  %1461 = vmatprep.subr.mxu0 0.0
  %1462 = vmatpush1.msra.mxu0 0.0
  %1463 = vmatprep.subr.mxu0 0.0
  %1464 = vmatpush1.msra.mxu0 0.0
  %1465 = vmatprep.subr.mxu0 0.0
  %1466 = vmatpush1.msra.mxu0 0.0
  %1467 = vmatprep.subr.mxu0 0.0
  %1468 = vmatpush1.msra.mxu0 0.0
  %1469 = vmatprep.subr.mxu0 0.0
  %1470 = vmatpush1.msra.mxu0 0.0
  %1471 = vmatprep.subr.mxu0 0.0
  %1472 = vmatpush1.msra.mxu0 0.0
  %1473 = vmatprep.mubr.f32.mxu0 0.0
  %1474 = vmatmul.mubr.f32.gmra.mrb[0].mxu0 %v1269
  %v1475 = vpop.f32.mrb[0].mxu0
  %v1476 = vadd.f32 %v1408, %v1475
  %v1477 = vpop.f32.mrb[0].mxu0
  %1478 = vmatprep.mubr.f32.mxu0 0.0
  %1479 = vmatmul.mubr.f32.gmra.mrb[0].mxu0 %v1272
  %v1480 = vpop.f32.mrb[0].mxu0
  %v1481 = vadd.f32 %v1408, %v1480
  %v1482 = vpop.f32.mrb[0].mxu0
  %1483 = vmatprep.mubr.f32.mxu0 0.0
  %1484 = vmatmul.mubr.f32.gmra.mrb[0].mxu0 %v1275
  %v1485 = vpop.f32.mrb[0].mxu0
  %v1486 = vadd.f32 %v1408, %v1485
  %v1487 = vpop.f32.mrb[0].mxu0
  %1488 = vmatprep.mubr.f32.mxu0 0.0
  %1489 = vmatmul.mubr.f32.gmra.mrb[0].mxu0 %v1278
  %v1490 = vpop.f32.mrb[0].mxu0
  %v1491 = vadd.f32 %v1408, %v1490
  %v1492 = vpop.f32.mrb[0].mxu0
  %1493 = vmatprep.mubr.f32.mxu0 0.0
  %1494 = vmatmul.mubr.f32.gmra.mrb[0].mxu0 %v1281
  %v1495 = vpop.f32.mrb[0].mxu0
  %v1496 = vadd.f32 %v1408, %v1495
  %v1497 = vpop.f32.mrb[0].mxu0
  %1498 = vmatprep.mubr.f32.mxu0 0.0
  %1499 = vmatmul.mubr.f32.gmra.mrb[0].mxu0 %v1284
  %v1500 = vpop.f32.mrb[0].mxu0
  %v1501 = vadd.f32 %v1408, %v1500
  %v1502 = vpop.f32.mrb[0].mxu0
  %1503 = vmatprep.mubr.f32.mxu0 0.0
  %1504 = vmatmul.mubr.f32.gmra.mrb[0].mxu0 %v1287
  %v1505 = vpop.f32.mrb[0].mxu0
  %v1506 = vadd.f32 %v1408, %v1505
  %v1507 = vpop.f32.mrb[0].mxu0
  %1508 = vmatprep.mubr.f32.mxu0 0.0
  %1509 = vmatmul.mubr.f32.gmra.mrb[0].mxu0 %v1290
  %v1510 = vpop.f32.mrb[0].mxu0
  %v1511 = vadd.f32 %v1408, %v1510
  %v1512 = vpop.f32.mrb[0].mxu0
  %1513 = vdwg.mxu0
  %v1514 = vmul.f32 %v1476, %v69
  %v1515 = vmul.f32 %v1481, %v70
  %v1516 = vmul.f32 %v1486, %v71
  %v1517 = vmul.f32 %v1491, %v72
  %v1518 = vmul.f32 %v1496, %v73
  %v1519 = vmul.f32 %v1501, %v74
  %v1520 = vmul.f32 %v1506, %v75
  %v1521 = vmul.f32 %v1511, %v76
  %v1523 = vsel %vm89, %v1256, 0
  %v1526 = vsel %vm89, %v1261, 0
  %v1529 = vsel %vm89, %v1397, 0
  %v1532 = vsel %vm89, %v1398, 0
  %v1535 = vsel %vm89, %v1399, 0
  %v1538 = vsel %vm89, %v1400, 0
  %v1541 = vsel %vm89, %v1401, 0
  %v1544 = vsel %vm89, %v1402, 0
  %v1547 = vsel %vm89, %v1403, 0
  %v1550 = vsel %vm89, %v1404, 0
  %1552 = vmatprep.subr.mxu0 0.0
  %1553 = vmatpush1.xpose.msra.mxu0 %v1529
  %1554 = vmatprep.subr.mxu0 0.0
  %1555 = vmatpush1.xpose.msra.mxu0 %v1532
  %1556 = vmatprep.subr.mxu0 0.0
  %1557 = vmatpush1.xpose.msra.mxu0 %v1535
  %1558 = vmatprep.subr.mxu0 0.0
  %1559 = vmatpush1.xpose.msra.mxu0 %v1538
  %1560 = vmatprep.subr.mxu0 0.0
  %1561 = vmatpush1.xpose.msra.mxu0 %v1541
  %1562 = vmatprep.subr.mxu0 0.0
  %1563 = vmatpush1.xpose.msra.mxu0 %v1544
  %1564 = vmatprep.subr.mxu0 0.0
  %1565 = vmatpush1.xpose.msra.mxu0 %v1547
  %1566 = vmatprep.subr.mxu0 0.0
  %1567 = vmatpush1.xpose.msra.mxu0 %v1550
  %1568 = vmatprep.subr.mxu0 0.0
  %1569 = vmatpush1.xpose.msra.mxu0 0.0
  %1570 = vmatprep.subr.mxu0 0.0
  %1571 = vmatpush1.xpose.msra.mxu0 0.0
  %1572 = vmatprep.subr.mxu0 0.0
  %1573 = vmatpush1.xpose.msra.mxu0 0.0
  %1574 = vmatprep.subr.mxu0 0.0
  %1575 = vmatpush1.xpose.msra.mxu0 0.0
  %1576 = vmatprep.subr.mxu0 0.0
  %1577 = vmatpush1.xpose.msra.mxu0 0.0
  %1578 = vmatprep.subr.mxu0 0.0
  %1579 = vmatpush1.xpose.msra.mxu0 0.0
  %1580 = vmatprep.subr.mxu0 0.0
  %1581 = vmatpush1.xpose.msra.mxu0 0.0
  %1582 = vmatprep.subr.mxu0 0.0
  %1583 = vmatpush1.xpose.msra.mxu0 0.0
  %1584 = vmatprep.subr.mxu0 0.0
  %1585 = vmatpush1.xpose.msra.mxu0 0.0
  %1586 = vmatprep.subr.mxu0 0.0
  %1587 = vmatpush1.xpose.msra.mxu0 0.0
  %1588 = vmatprep.subr.mxu0 0.0
  %1589 = vmatpush1.xpose.msra.mxu0 0.0
  %1590 = vmatprep.subr.mxu0 0.0
  %1591 = vmatpush1.xpose.msra.mxu0 0.0
  %1592 = vmatprep.subr.mxu0 0.0
  %1593 = vmatpush1.xpose.msra.mxu0 0.0
  %1594 = vmatprep.subr.mxu0 0.0
  %1595 = vmatpush1.xpose.msra.mxu0 0.0
  %1596 = vmatprep.subr.mxu0 0.0
  %1597 = vmatpush1.xpose.msra.mxu0 0.0
  %1598 = vmatprep.subr.mxu0 0.0
  %1599 = vmatpush1.xpose.msra.mxu0 0.0
  %1600 = vmatprep.subr.mxu0 0.0
  %1601 = vmatpush1.xpose.msra.mxu0 0.0
  %1602 = vmatprep.subr.mxu0 0.0
  %1603 = vmatpush1.xpose.msra.mxu0 0.0
  %1604 = vmatprep.subr.mxu0 0.0
  %1605 = vmatpush1.xpose.msra.mxu0 0.0
  %1606 = vmatprep.subr.mxu0 0.0
  %1607 = vmatpush1.xpose.msra.mxu0 0.0
  %1608 = vmatprep.subr.mxu0 0.0
  %1609 = vmatpush1.xpose.msra.mxu0 0.0
  %1610 = vmatprep.subr.mxu0 0.0
  %1611 = vmatpush1.xpose.msra.mxu0 0.0
  %1612 = vmatprep.subr.mxu0 0.0
  %1613 = vmatpush1.xpose.msra.mxu0 0.0
  %1614 = vmatprep.subr.mxu0 0.0
  %1615 = vmatpush1.xpose.msra.mxu0 0.0
  %1616 = vmatprep.mubr.f32.mxu0 0.0
  %1617 = vmatmul.mubr.f32.gmra.mrb[0].mxu0 %v1523
  %v1618 = vpop.f32.mrb[0].mxu0
  %v1619 = vadd.f32 0.0, %v1618
  %v1620 = vpop.f32.mrb[0].mxu0
  %1621 = vmatprep.mubr.f32.mxu0 0.0
  %1622 = vmatmul.mubr.f32.gmra.mrb[0].mxu0 %v1526
  %v1623 = vpop.f32.mrb[0].mxu0
  %v1624 = vadd.f32 0.0, %v1623
  %v1625 = vpop.f32.mrb[0].mxu0
  %1626 = vdwg.mxu0
  %v1627 = vmul.f32 %v1619, 0.35355338
  %v1628 = vmul.f32 %v1624, 0.35355338
  %v1629 = vadd.f32 %v1627, %v59
  %v1630 = vadd.f32 %v1628, %v60
  %v1631 = vsel %vm738, %v1629, -inf
  %1632 = vmax.xlane.f32.xlu0 %v1631
  %v1633 = vpop.xlane.xlu0 %1632
  %v1634 = vsel %vm738, %v1630, -inf
  %1635 = vmax.xlane.f32.xlu0 %v1634
  %v1636 = vpop.xlane.xlu0 %1635
  %v1637 = vsub.f32 %v1629, %v1633
  %v1638 = vsub.f32 %v1630, %v1636
  %v1639 = vmul.f32 %v1637, 1.442695
  %v1640 = vpow.pop %v1639
  %v1641 = vmul.f32 %v1638, 1.442695
  %v1642 = vpow.pop %v1641
  %v1644 = vsel %vm738, %v1640, 0
  %v1647 = vsel %vm738, %v1642, 0
  %1649 = vmatprep.subr.mxu0 0.0
  %1650 = vmatpush1.msra.mxu0 %v77
  %1651 = vmatprep.subr.mxu0 0.0
  %1652 = vmatpush1.msra.mxu0 %v78
  %1653 = vmatprep.subr.mxu0 0.0
  %1654 = vmatpush1.msra.mxu0 %v79
  %1655 = vmatprep.subr.mxu0 0.0
  %1656 = vmatpush1.msra.mxu0 %v80
  %1657 = vmatprep.subr.mxu0 0.0
  %1658 = vmatpush1.msra.mxu0 %v81
  %1659 = vmatprep.subr.mxu0 0.0
  %1660 = vmatpush1.msra.mxu0 %v82
  %1661 = vmatprep.subr.mxu0 0.0
  %1662 = vmatpush1.msra.mxu0 %v83
  %1663 = vmatprep.subr.mxu0 0.0
  %1664 = vmatpush1.msra.mxu0 %v84
  %1665 = vmatprep.subr.mxu0 0.0
  %1666 = vmatpush1.msra.mxu0 0.0
  %1667 = vmatprep.subr.mxu0 0.0
  %1668 = vmatpush1.msra.mxu0 0.0
  %1669 = vmatprep.subr.mxu0 0.0
  %1670 = vmatpush1.msra.mxu0 0.0
  %1671 = vmatprep.subr.mxu0 0.0
  %1672 = vmatpush1.msra.mxu0 0.0
  %1673 = vmatprep.subr.mxu0 0.0
  %1674 = vmatpush1.msra.mxu0 0.0
  %1675 = vmatprep.subr.mxu0 0.0
  %1676 = vmatpush1.msra.mxu0 0.0
  %1677 = vmatprep.subr.mxu0 0.0
  %1678 = vmatpush1.msra.mxu0 0.0
  %1679 = vmatprep.subr.mxu0 0.0
  %1680 = vmatpush1.msra.mxu0 0.0
  %1681 = vmatprep.subr.mxu0 0.0
  %1682 = vmatpush1.msra.mxu0 0.0
  %1683 = vmatprep.subr.mxu0 0.0
  %1684 = vmatpush1.msra.mxu0 0.0
  %1685 = vmatprep.subr.mxu0 0.0
  %1686 = vmatpush1.msra.mxu0 0.0
  %1687 = vmatprep.subr.mxu0 0.0
  %1688 = vmatpush1.msra.mxu0 0.0
  %1689 = vmatprep.subr.mxu0 0.0
  %1690 = vmatpush1.msra.mxu0 0.0
  %1691 = vmatprep.subr.mxu0 0.0
  %1692 = vmatpush1.msra.mxu0 0.0
  %1693 = vmatprep.subr.mxu0 0.0
  %1694 = vmatpush1.msra.mxu0 0.0
  %1695 = vmatprep.subr.mxu0 0.0
  %1696 = vmatpush1.msra.mxu0 0.0
  %1697 = vmatprep.subr.mxu0 0.0
  %1698 = vmatpush1.msra.mxu0 0.0
  %1699 = vmatprep.subr.mxu0 0.0
  %1700 = vmatpush1.msra.mxu0 0.0
  %1701 = vmatprep.subr.mxu0 0.0
  %1702 = vmatpush1.msra.mxu0 0.0
  %1703 = vmatprep.subr.mxu0 0.0
  %1704 = vmatpush1.msra.mxu0 0.0
  %1705 = vmatprep.subr.mxu0 0.0
  %1706 = vmatpush1.msra.mxu0 0.0
  %1707 = vmatprep.subr.mxu0 0.0
  %1708 = vmatpush1.msra.mxu0 0.0
  %1709 = vmatprep.subr.mxu0 0.0
  %1710 = vmatpush1.msra.mxu0 0.0
  %1711 = vmatprep.subr.mxu0 0.0
  %1712 = vmatpush1.msra.mxu0 0.0
  %1713 = vmatprep.mubr.f32.mxu0 0.0
  %1714 = vmatmul.mubr.f32.gmra.mrb[0].mxu0 %v1644
  %v1715 = vpop.f32.mrb[0].mxu0
  %v1716 = vadd.f32 0.0, %v1715
  %v1717 = vpop.f32.mrb[0].mxu0
  %1718 = vmatprep.mubr.f32.mxu0 0.0
  %1719 = vmatmul.mubr.f32.gmra.mrb[0].mxu0 %v1647
  %v1720 = vpop.f32.mrb[0].mxu0
  %v1721 = vadd.f32 0.0, %v1720
  %v1722 = vpop.f32.mrb[0].mxu0
  %1723 = vdwg.mxu0
  %v1724 = vrcp.pop %v1716
  %v1725 = vmul.f32 %v1640, %v1724
  %v1726 = vrcp.pop %v1721
  %v1727 = vmul.f32 %v1642, %v1726
  %v1728 = vmul.f32 %v1725, %v85
  %v1729 = vmul.f32 %v1727, %v86
  %v1731 = vsel %vm738, %v1728, 0
  %v1734 = vsel %vm738, %v1729, 0
  %1736 = vmatprep.subr.mxu0 0.0
  %1737 = vmatpush1.msra.mxu0 %v1514
  %1738 = vmatprep.subr.mxu0 0.0
  %1739 = vmatpush1.msra.mxu0 %v1515
  %1740 = vmatprep.subr.mxu0 0.0
  %1741 = vmatpush1.msra.mxu0 %v1516
  %1742 = vmatprep.subr.mxu0 0.0
  %1743 = vmatpush1.msra.mxu0 %v1517
  %1744 = vmatprep.subr.mxu0 0.0
  %1745 = vmatpush1.msra.mxu0 %v1518
  %1746 = vmatprep.subr.mxu0 0.0
  %1747 = vmatpush1.msra.mxu0 %v1519
  %1748 = vmatprep.subr.mxu0 0.0
  %1749 = vmatpush1.msra.mxu0 %v1520
  %1750 = vmatprep.subr.mxu0 0.0
  %1751 = vmatpush1.msra.mxu0 %v1521
  %1752 = vmatprep.subr.mxu0 0.0
  %1753 = vmatpush1.msra.mxu0 0.0
  %1754 = vmatprep.subr.mxu0 0.0
  %1755 = vmatpush1.msra.mxu0 0.0
  %1756 = vmatprep.subr.mxu0 0.0
  %1757 = vmatpush1.msra.mxu0 0.0
  %1758 = vmatprep.subr.mxu0 0.0
  %1759 = vmatpush1.msra.mxu0 0.0
  %1760 = vmatprep.subr.mxu0 0.0
  %1761 = vmatpush1.msra.mxu0 0.0
  %1762 = vmatprep.subr.mxu0 0.0
  %1763 = vmatpush1.msra.mxu0 0.0
  %1764 = vmatprep.subr.mxu0 0.0
  %1765 = vmatpush1.msra.mxu0 0.0
  %1766 = vmatprep.subr.mxu0 0.0
  %1767 = vmatpush1.msra.mxu0 0.0
  %1768 = vmatprep.subr.mxu0 0.0
  %1769 = vmatpush1.msra.mxu0 0.0
  %1770 = vmatprep.subr.mxu0 0.0
  %1771 = vmatpush1.msra.mxu0 0.0
  %1772 = vmatprep.subr.mxu0 0.0
  %1773 = vmatpush1.msra.mxu0 0.0
  %1774 = vmatprep.subr.mxu0 0.0
  %1775 = vmatpush1.msra.mxu0 0.0
  %1776 = vmatprep.subr.mxu0 0.0
  %1777 = vmatpush1.msra.mxu0 0.0
  %1778 = vmatprep.subr.mxu0 0.0
  %1779 = vmatpush1.msra.mxu0 0.0
  %1780 = vmatprep.subr.mxu0 0.0
  %1781 = vmatpush1.msra.mxu0 0.0
  %1782 = vmatprep.subr.mxu0 0.0
  %1783 = vmatpush1.msra.mxu0 0.0
  %1784 = vmatprep.subr.mxu0 0.0
  %1785 = vmatpush1.msra.mxu0 0.0
  %1786 = vmatprep.subr.mxu0 0.0
  %1787 = vmatpush1.msra.mxu0 0.0
  %1788 = vmatprep.subr.mxu0 0.0
  %1789 = vmatpush1.msra.mxu0 0.0
  %1790 = vmatprep.subr.mxu0 0.0
  %1791 = vmatpush1.msra.mxu0 0.0
  %1792 = vmatprep.subr.mxu0 0.0
  %1793 = vmatpush1.msra.mxu0 0.0
  %1794 = vmatprep.subr.mxu0 0.0
  %1795 = vmatpush1.msra.mxu0 0.0
  %1796 = vmatprep.subr.mxu0 0.0
  %1797 = vmatpush1.msra.mxu0 0.0
  %1798 = vmatprep.subr.mxu0 0.0
  %1799 = vmatpush1.msra.mxu0 0.0
  %1800 = vmatprep.mubr.f32.mxu0 0.0
  %1801 = vmatmul.mubr.f32.gmra.mrb[0].mxu0 %v1731
  %v1802 = vpop.f32.mrb[0].mxu0
  %v1803 = vadd.f32 0.0, %v1802
  %v1804 = vpop.f32.mrb[0].mxu0
  %1805 = vmatprep.mubr.f32.mxu0 0.0
  %1806 = vmatmul.mubr.f32.gmra.mrb[0].mxu0 %v1734
  %v1807 = vpop.f32.mrb[0].mxu0
  %v1808 = vadd.f32 0.0, %v1807
  %v1809 = vpop.f32.mrb[0].mxu0
  %1810 = vdwg.mxu0
  %v1811 = vlaneseq
  %v1812 = vshrl.u32 %v1811, 7
  %v1813 = vsub.s32 0, %v1812
  %v1814 = vrot.slane %v1073, %v1813
  %v1816 = vsel %vm89, %v1803, 0
  %v1819 = vsel %vm89, %v1808, 0
  %1821 = vmatprep.subr.mxu0 0.0
  %1822 = vmatpush1.msra.mxu0 %v1066
  %1823 = vmatprep.subr.mxu0 0.0
  %1824 = vmatpush1.msra.mxu0 %v1067
  %1825 = vmatprep.subr.mxu0 0.0
  %1826 = vmatpush1.msra.mxu0 %v1068
  %1827 = vmatprep.subr.mxu0 0.0
  %1828 = vmatpush1.msra.mxu0 %v1069
  %1829 = vmatprep.subr.mxu0 0.0
  %1830 = vmatpush1.msra.mxu0 0.0
  %1831 = vmatprep.subr.mxu0 0.0
  %1832 = vmatpush1.msra.mxu0 0.0
  %1833 = vmatprep.subr.mxu0 0.0
  %1834 = vmatpush1.msra.mxu0 0.0
  %1835 = vmatprep.subr.mxu0 0.0
  %1836 = vmatpush1.msra.mxu0 0.0
  %1837 = vmatprep.subr.mxu0 0.0
  %1838 = vmatpush1.msra.mxu0 0.0
  %1839 = vmatprep.subr.mxu0 0.0
  %1840 = vmatpush1.msra.mxu0 0.0
  %1841 = vmatprep.subr.mxu0 0.0
  %1842 = vmatpush1.msra.mxu0 0.0
  %1843 = vmatprep.subr.mxu0 0.0
  %1844 = vmatpush1.msra.mxu0 0.0
  %1845 = vmatprep.subr.mxu0 0.0
  %1846 = vmatpush1.msra.mxu0 0.0
  %1847 = vmatprep.subr.mxu0 0.0
  %1848 = vmatpush1.msra.mxu0 0.0
  %1849 = vmatprep.subr.mxu0 0.0
  %1850 = vmatpush1.msra.mxu0 0.0
  %1851 = vmatprep.subr.mxu0 0.0
  %1852 = vmatpush1.msra.mxu0 0.0
  %1853 = vmatprep.subr.mxu0 0.0
  %1854 = vmatpush1.msra.mxu0 0.0
  %1855 = vmatprep.subr.mxu0 0.0
  %1856 = vmatpush1.msra.mxu0 0.0
  %1857 = vmatprep.subr.mxu0 0.0
  %1858 = vmatpush1.msra.mxu0 0.0
  %1859 = vmatprep.subr.mxu0 0.0
  %1860 = vmatpush1.msra.mxu0 0.0
  %1861 = vmatprep.subr.mxu0 0.0
  %1862 = vmatpush1.msra.mxu0 0.0
  %1863 = vmatprep.subr.mxu0 0.0
  %1864 = vmatpush1.msra.mxu0 0.0
  %1865 = vmatprep.subr.mxu0 0.0
  %1866 = vmatpush1.msra.mxu0 0.0
  %1867 = vmatprep.subr.mxu0 0.0
  %1868 = vmatpush1.msra.mxu0 0.0
  %1869 = vmatprep.subr.mxu0 0.0
  %1870 = vmatpush1.msra.mxu0 0.0
  %1871 = vmatprep.subr.mxu0 0.0
  %1872 = vmatpush1.msra.mxu0 0.0
  %1873 = vmatprep.subr.mxu0 0.0
  %1874 = vmatpush1.msra.mxu0 0.0
  %1875 = vmatprep.subr.mxu0 0.0
  %1876 = vmatpush1.msra.mxu0 0.0
  %1877 = vmatprep.subr.mxu0 0.0
  %1878 = vmatpush1.msra.mxu0 0.0
  %1879 = vmatprep.subr.mxu0 0.0
  %1880 = vmatpush1.msra.mxu0 0.0
  %1881 = vmatprep.subr.mxu0 0.0
  %1882 = vmatpush1.msra.mxu0 0.0
  %1883 = vmatprep.subr.mxu0 0.0
  %1884 = vmatpush1.msra.mxu0 0.0
  %1885 = vmatprep.mubr.f32.mxu0 0.0
  %1886 = vmatmul.mubr.f32.gmra.mrb[0].mxu0 %v1816
  %v1887 = vpop.f32.mrb[0].mxu0
  %v1888 = vadd.f32 %v1814, %v1887
  %v1889 = vpop.f32.mrb[0].mxu0
  %1890 = vmatprep.mubr.f32.mxu0 0.0
  %1891 = vmatmul.mubr.f32.gmra.mrb[0].mxu0 %v1819
  %v1892 = vpop.f32.mrb[0].mxu0
  %v1893 = vadd.f32 %v1814, %v1892
  %v1894 = vpop.f32.mrb[0].mxu0
  %1895 = vdwg.mxu0
  %v1896 = vadd.f32 %v1004, %v1888
  %v1897 = vadd.f32 %v1005, %v1893
  %v1898 = vld [vmem:[%s14 + $0x2] sm:$0x1]
  %v1899 = vld [vmem:[%s15 + $0x2] sm:$0x1]
  %v1900 = vsel %vm89, %v1896, 0.0
  %1901 = vadd.xlane.f32.xlu0 %v1900
  %v1902 = vpop.xlane.xlu0 %1901
  %v1903 = vsel %vm89, %v1897, 0.0
  %1904 = vadd.xlane.f32.xlu0 %v1903
  %v1905 = vpop.xlane.xlu0 %1904
  %v1906 = vmul.f32 %v1902, %v96
  %v1907 = vmul.f32 %v1905, %v96
  %v1908 = vmul.f32 %v1896, %v1896
  %v1909 = vmul.f32 %v1897, %v1897
  %v1910 = vsel %vm89, %v1908, 0.0
  %1911 = vadd.xlane.f32.xlu0 %v1910
  %v1912 = vpop.xlane.xlu0 %1911
  %v1913 = vsel %vm89, %v1909, 0.0
  %1914 = vadd.xlane.f32.xlu0 %v1913
  %v1915 = vpop.xlane.xlu0 %1914
  %v1916 = vmul.f32 %v1912, %v96
  %v1917 = vmul.f32 %v1915, %v96
  %v1918 = vmul.f32 %v1906, %v1906
  %v1919 = vmul.f32 %v1907, %v1907
  %v1920 = vsub.f32 %v1916, %v1918
  %v1921 = vsub.f32 %v1917, %v1919
  %v1922 = vsub.f32 %v1896, %v1906
  %v1923 = vsub.f32 %v1897, %v1907
  %v1924 = vadd.f32 %v1920, 1e-06
  %v1925 = vadd.f32 %v1921, 1e-06
  %v1926 = vrsqrt.pop %v1924
  %v1927 = vrsqrt.pop %v1925
  %v1928 = vmul.f32 %v1922, %v1926
  %v1929 = vmul.f32 %v1923, %v1927
  %v1930 = vlaneseq
  %v1931 = vshrl.u32 %v1930, 7
  %v1932 = vsub.s32 0, %v1931
  %v1933 = vrot.slane %v1898, %v1932
  %v1934 = vmul.f32 %v1928, %v1933
  %v1935 = vmul.f32 %v1929, %v1933
  %v1936 = vlaneseq
  %v1937 = vshrl.u32 %v1936, 7
  %v1938 = vsub.s32 0, %v1937
  %v1939 = vrot.slane %v1899, %v1938
  %v1940 = vadd.f32 %v1934, %v1939
  %v1941 = vadd.f32 %v1935, %v1939
  %v1942 = vld [vmem:[%s10] sm:$0xff]
  %v1943 = vld [vmem:[%s10 + $0x8] sm:$0xff]
  %v1944 = vld [vmem:[%s10 + $0x10] sm:$0xff]
  %v1945 = vld [vmem:[%s10 + $0x18] sm:$0xff]
  %v1946 = vld [vmem:[%s11] sm:$0x1]
  %v1948 = vlaneseq
  %v1949 = vshrl.u32 %v1948, 7
  %v1950 = vsub.s32 0, %v1949
  %v1951 = vrot.slane %v1946, %v1950
  %v1954 = vsel %vm89, %v1940, 0
  %v1957 = vsel %vm89, %v1941, 0
  %1959 = vmatprep.subr.mxu0 0.0
  %1960 = vmatpush1.msra.mxu0 %v1942
  %1961 = vmatprep.subr.mxu0 0.0
  %1962 = vmatpush1.msra.mxu0 %v1943
  %1963 = vmatprep.subr.mxu0 0.0
  %1964 = vmatpush1.msra.mxu0 %v1944
  %1965 = vmatprep.subr.mxu0 0.0
  %1966 = vmatpush1.msra.mxu0 %v1945
  %1967 = vmatprep.subr.mxu0 0.0
  %1968 = vmatpush1.msra.mxu0 0.0
  %1969 = vmatprep.subr.mxu0 0.0
  %1970 = vmatpush1.msra.mxu0 0.0
  %1971 = vmatprep.subr.mxu0 0.0
  %1972 = vmatpush1.msra.mxu0 0.0
  %1973 = vmatprep.subr.mxu0 0.0
  %1974 = vmatpush1.msra.mxu0 0.0
  %1975 = vmatprep.subr.mxu0 0.0
  %1976 = vmatpush1.msra.mxu0 0.0
  %1977 = vmatprep.subr.mxu0 0.0
  %1978 = vmatpush1.msra.mxu0 0.0
  %1979 = vmatprep.subr.mxu0 0.0
  %1980 = vmatpush1.msra.mxu0 0.0
  %1981 = vmatprep.subr.mxu0 0.0
  %1982 = vmatpush1.msra.mxu0 0.0
  %1983 = vmatprep.subr.mxu0 0.0
  %1984 = vmatpush1.msra.mxu0 0.0
  %1985 = vmatprep.subr.mxu0 0.0
  %1986 = vmatpush1.msra.mxu0 0.0
  %1987 = vmatprep.subr.mxu0 0.0
  %1988 = vmatpush1.msra.mxu0 0.0
  %1989 = vmatprep.subr.mxu0 0.0
  %1990 = vmatpush1.msra.mxu0 0.0
  %1991 = vmatprep.subr.mxu0 0.0
  %1992 = vmatpush1.msra.mxu0 0.0
  %1993 = vmatprep.subr.mxu0 0.0
  %1994 = vmatpush1.msra.mxu0 0.0
  %1995 = vmatprep.subr.mxu0 0.0
  %1996 = vmatpush1.msra.mxu0 0.0
  %1997 = vmatprep.subr.mxu0 0.0
  %1998 = vmatpush1.msra.mxu0 0.0
  %1999 = vmatprep.subr.mxu0 0.0
  %2000 = vmatpush1.msra.mxu0 0.0
  %2001 = vmatprep.subr.mxu0 0.0
  %2002 = vmatpush1.msra.mxu0 0.0
  %2003 = vmatprep.subr.mxu0 0.0
  %2004 = vmatpush1.msra.mxu0 0.0
  %2005 = vmatprep.subr.mxu0 0.0
  %2006 = vmatpush1.msra.mxu0 0.0
  %2007 = vmatprep.subr.mxu0 0.0
  %2008 = vmatpush1.msra.mxu0 0.0
  %2009 = vmatprep.subr.mxu0 0.0
  %2010 = vmatpush1.msra.mxu0 0.0
  %2011 = vmatprep.subr.mxu0 0.0
  %2012 = vmatpush1.msra.mxu0 0.0
  %2013 = vmatprep.subr.mxu0 0.0
  %2014 = vmatpush1.msra.mxu0 0.0
  %2015 = vmatprep.subr.mxu0 0.0
  %2016 = vmatpush1.msra.mxu0 0.0
  %2017 = vmatprep.subr.mxu0 0.0
  %2018 = vmatpush1.msra.mxu0 0.0
  %2019 = vmatprep.subr.mxu0 0.0
  %2020 = vmatpush1.msra.mxu0 0.0
  %2021 = vmatprep.subr.mxu0 0.0
  %2022 = vmatpush1.msra.mxu0 0.0
  %2023 = vmatprep.mubr.f32.mxu0 0.0
  %2024 = vmatmul.mubr.f32.gmra.mrb[0].mxu0 %v1954
  %v2025 = vpop.f32.mrb[0].mxu0
  %v2026 = vadd.f32 %v1951, %v2025
  %v2027 = vpop.f32.mrb[0].mxu0
  %2028 = vmatprep.mubr.f32.mxu0 0.0
  %2029 = vmatmul.mubr.f32.gmra.mrb[0].mxu0 %v1957
  %v2030 = vpop.f32.mrb[0].mxu0
  %v2031 = vadd.f32 %v1951, %v2030
  %v2032 = vpop.f32.mrb[0].mxu0
  %2033 = vdwg.mxu0
  %v2034 = vmax.f32 %v2026, 0.0
  %v2035 = vmax.f32 %v2031, 0.0
  %v2036 = vld [vmem:[%s12] sm:$0xff]
  %v2037 = vld [vmem:[%s12 + $0x8] sm:$0xff]
  %v2038 = vld [vmem:[%s12 + $0x10] sm:$0xff]
  %v2039 = vld [vmem:[%s12 + $0x18] sm:$0xff]
  %v2040 = vld [vmem:[%s12 + $0x20] sm:$0xff]
  %v2041 = vld [vmem:[%s12 + $0x28] sm:$0xff]
  %v2042 = vld [vmem:[%s12 + $0x30] sm:$0xff]
  %v2043 = vld [vmem:[%s12 + $0x38] sm:$0xff]
  %v2044 = vld [vmem:[%s12 + $0x40] sm:$0xff]
  %v2045 = vld [vmem:[%s12 + $0x48] sm:$0xff]
  %v2046 = vld [vmem:[%s12 + $0x50] sm:$0xff]
  %v2047 = vld [vmem:[%s12 + $0x58] sm:$0xff]
  %v2048 = vld [vmem:[%s12 + $0x60] sm:$0xff]
  %v2049 = vld [vmem:[%s12 + $0x68] sm:$0xff]
  %v2050 = vld [vmem:[%s12 + $0x70] sm:$0xff]
  %v2051 = vld [vmem:[%s12 + $0x78] sm:$0xff]
  %2052 = vmatprep.subr.mxu0 0.0
  %2053 = vmatpush1.msra.mxu0 %v2036
  %2054 = vmatprep.subr.mxu0 0.0
  %2055 = vmatpush1.msra.mxu0 %v2037
  %2056 = vmatprep.subr.mxu0 0.0
  %2057 = vmatpush1.msra.mxu0 %v2038
  %2058 = vmatprep.subr.mxu0 0.0
  %2059 = vmatpush1.msra.mxu0 %v2039
  %2060 = vmatprep.subr.mxu0 0.0
  %2061 = vmatpush1.msra.mxu0 %v2040
  %2062 = vmatprep.subr.mxu0 0.0
  %2063 = vmatpush1.msra.mxu0 %v2041
  %2064 = vmatprep.subr.mxu0 0.0
  %2065 = vmatpush1.msra.mxu0 %v2042
  %2066 = vmatprep.subr.mxu0 0.0
  %2067 = vmatpush1.msra.mxu0 %v2043
  %2068 = vmatprep.subr.mxu0 0.0
  %2069 = vmatpush1.msra.mxu0 %v2044
  %2070 = vmatprep.subr.mxu0 0.0
  %2071 = vmatpush1.msra.mxu0 %v2045
  %2072 = vmatprep.subr.mxu0 0.0
  %2073 = vmatpush1.msra.mxu0 %v2046
  %2074 = vmatprep.subr.mxu0 0.0
  %2075 = vmatpush1.msra.mxu0 %v2047
  %2076 = vmatprep.subr.mxu0 0.0
  %2077 = vmatpush1.msra.mxu0 %v2048
  %2078 = vmatprep.subr.mxu0 0.0
  %2079 = vmatpush1.msra.mxu0 %v2049
  %2080 = vmatprep.subr.mxu0 0.0
  %2081 = vmatpush1.msra.mxu0 %v2050
  %2082 = vmatprep.subr.mxu0 0.0
  %2083 = vmatpush1.msra.mxu0 %v2051
  %2084 = vmatprep.subr.mxu0 0.0
  %2085 = vmatpush1.msra.mxu0 0.0
  %2086 = vmatprep.subr.mxu0 0.0
  %2087 = vmatpush1.msra.mxu0 0.0
  %2088 = vmatprep.subr.mxu0 0.0
  %2089 = vmatpush1.msra.mxu0 0.0
  %2090 = vmatprep.subr.mxu0 0.0
  %2091 = vmatpush1.msra.mxu0 0.0
  %2092 = vmatprep.subr.mxu0 0.0
  %2093 = vmatpush1.msra.mxu0 0.0
  %2094 = vmatprep.subr.mxu0 0.0
  %2095 = vmatpush1.msra.mxu0 0.0
  %2096 = vmatprep.subr.mxu0 0.0
  %2097 = vmatpush1.msra.mxu0 0.0
  %2098 = vmatprep.subr.mxu0 0.0
  %2099 = vmatpush1.msra.mxu0 0.0
  %2100 = vmatprep.subr.mxu0 0.0
  %2101 = vmatpush1.msra.mxu0 0.0
  %2102 = vmatprep.subr.mxu0 0.0
  %2103 = vmatpush1.msra.mxu0 0.0
  %2104 = vmatprep.subr.mxu0 0.0
  %2105 = vmatpush1.msra.mxu0 0.0
  %2106 = vmatprep.subr.mxu0 0.0
  %2107 = vmatpush1.msra.mxu0 0.0
  %2108 = vmatprep.subr.mxu0 0.0
  %2109 = vmatpush1.msra.mxu0 0.0
  %2110 = vmatprep.subr.mxu0 0.0
  %2111 = vmatpush1.msra.mxu0 0.0
  %2112 = vmatprep.subr.mxu0 0.0
  %2113 = vmatpush1.msra.mxu0 0.0
  %2114 = vmatprep.subr.mxu0 0.0
  %2115 = vmatpush1.msra.mxu0 0.0
  %2116 = vmatprep.mubr.f32.mxu0 0.0
  %2117 = vmatmul.mubr.f32.gmra.mrb[0].mxu0 %v2034
  %v2118 = vpop.f32.mrb[0].mxu0
  %v2119 = vadd.f32 0.0, %v2118
  %v2120 = vpop.f32.mrb[0].mxu0
  %2121 = vmatprep.mubr.f32.mxu0 0.0
  %2122 = vmatmul.mubr.f32.gmra.mrb[0].mxu0 %v2035
  %v2123 = vpop.f32.mrb[0].mxu0
  %v2124 = vadd.f32 0.0, %v2123
  %v2125 = vpop.f32.mrb[0].mxu0
  %2126 = vdwg.mxu0
  %v2127 = vadd.f32 %v1896, %v2119
  %v2128 = vadd.f32 %v1897, %v2124
  %v2129 = vld [vmem:[%s13] sm:$0x1]
  %v2131 = vlaneseq
  %v2132 = vshrl.u32 %v2131, 7
  %v2133 = vsub.s32 0, %v2132
  %v2134 = vrot.slane %v2129, %v2133
  %v2136 = vadd.f32 %v2127, %v2134
  %v2137 = vadd.f32 %v2128, %v2134
  %2138 = vst.msk [vmem:[%s16] sm:$0xff] %vm89, %v2136
  %2139 = vst.msk [vmem:[%s16 + $0x8] sm:$0xff] %vm89, %v2137
  %2140 = vrot.lane.b32.xlu0 %v1728, 32
  %v2141 = vpop.permute.xlu0 %2140
  %2142 = vrot.lane.b32.xlu0 %v1729, 32
  %v2143 = vpop.permute.xlu0 %2142
  %vm2146 = vcmask 785664
  %2147 = vst.msk [vmem:[%s16] sm:$0xff] %vm2146, %v2141
  %2148 = vst.msk [vmem:[%s16 + $0x8] sm:$0xff] %vm2146, %v2143
  %vm2149 = vcmask 1048320
  %2150 = vst.msk [vmem:[%s16] sm:$0xff] %vm2149, 0.0
  %2151 = vst.msk [vmem:[%s16 + $0x8] sm:$0xff] %vm2149, 0.0
  // Predicated region
  $region66: #{decoder_block.1} parent=0 // pred_check
    _
  $region67: #{decoder_block.1} parent=0 // pred_check_branch
    %2153 = sbr.rel (0) target = $region69
  $region68: #{decoder_block.1} parent=0 // pred_region
    _
  $region69: #{decoder_block.1} parent=0 // pred_fallthru
    _
  // Predicated region
  $region70: #{decoder_block.1} parent=0 // pred_check
    _
  $region71: #{decoder_block.1} parent=0 // pred_check_branch
    %2155 = sbr.rel (0) target = $region73
  $region72: #{decoder_block.1} parent=0 // pred_region
    _
  $region73: #{decoder_block.1} parent=0 // pred_fallthru
    _

</llo_original>
